<compile_context>
chip_gen: v7x
topology: tpu7x:2x2x1
jax: 0.10.0
libtpu: 0.0.40
codegen_flags: <defaults>
</compile_context>

<pallas_src>
import functools

import jax
import jax.numpy as jnp
from jax import lax
from jax.experimental import pallas as pl
from jax.experimental.pallas import tpu as pltpu


def _round_up(x, m):
    return ((x + m - 1) // m) * m


# ----------------------------------------------------------------------------
# Kernel: one tile of nodes -> relu( [onehot|counts] @ fused_table + bias )
# ----------------------------------------------------------------------------
def _uv_encoder_kernel(idx_ref, table_ref, bias_ref, out_ref, *, n_idx_cols):
    tile = idx_ref.shape[0]
    k_pad = table_ref.shape[0]
    cdt = table_ref.dtype                     # bf16 fed to the MXU

    idx = idx_ref[...]                        # [tile, 1+2H] i32 (pre-shifted ids)
    k_iota = lax.broadcasted_iota(jnp.int32, (tile, k_pad), 1)

    # Combined one-hot / count matrix, built directly in bf16 (counts <= 2H+1
    # are exactly representable).  Column 0 is the node id (self segment),
    # the rest are history item / rating ids already offset into their segment.
    lhs = (idx[:, 0:1] == k_iota).astype(cdt)
    for c in range(1, n_idx_cols):            # static, small trip count
        lhs = lhs + (idx[:, c:c + 1] == k_iota).astype(cdt)

    # Single K=K_pad MXU contraction against the fused (embedding @ W) table.
    acc = jnp.dot(lhs, table_ref[...], preferred_element_type=jnp.float32)
    acc = acc + bias_ref[...]                 # f32 bias, broadcasts over rows
    out_ref[...] = jnp.maximum(acc, 0.0).astype(out_ref.dtype)


# ----------------------------------------------------------------------------
# Pack-time fold: tables @ linear weights -> one resident [K_pad, D_pad] table.
# ----------------------------------------------------------------------------
def pack_params(params, embed_dim, hist_len, compute_dtype=jnp.bfloat16):
    d = embed_dim
    d_pad = _round_up(d, 128)

    feat = params["features"].astype(jnp.float32)       # [U, D]
    item = params["item_emb"].astype(jnp.float32)       # [I, D]
    rate = params["rating_emb"].astype(jnp.float32)     # [R, D]
    w_self = params["w_self"].astype(jnp.float32)       # [D, D]  (x @ w convention)
    w_neigh = params["w_neigh"].astype(jnp.float32)     # [D, D]
    inv_h = 1.0 / float(hist_len)

    seg_u = feat @ w_self                                # self contribution
    seg_i = (item @ w_neigh) * inv_h                     # mean folded in
    seg_r = (rate @ w_neigh) * inv_h

    n_u, n_i, n_r = feat.shape[0], item.shape[0], rate.shape[0]
    k = n_u + n_i + n_r
    k_pad = _round_up(k, 128)                            # lane-dense K for the LHS

    table = jnp.zeros((k_pad, d_pad), jnp.float32)
    table = table.at[:n_u, :d].set(seg_u)
    table = table.at[n_u:n_u + n_i, :d].set(seg_i)
    table = table.at[n_u + n_i:k, :d].set(seg_r)
    table = table.astype(compute_dtype)                  # single cast, f32 fold

    bias = jnp.zeros((1, d_pad), jnp.float32).at[:, :d].set(
        params["bias"].astype(jnp.float32))

    return {
        "embed_dim": d,
        "hist_len": hist_len,
        "table": table,           # [K_pad, D_pad] bf16, VMEM-resident
        "bias": bias,             # [1, D_pad]    f32
        "off_items": n_u,         # segment offsets for pre-shifting ids
        "off_rates": n_u + n_i,
    }


# ----------------------------------------------------------------------------
# pallas_call builder (optionally single-buffering the constant operands).
# ----------------------------------------------------------------------------
def _build_call(n_pad, tile, n_idx_cols, d_pad, table_shape, bias_shape,
                out_dtype, single_buffer_constants):
    def resident(shape):
        if single_buffer_constants:
            # Constant index_map -> no need for double buffering.
            return pl.BlockSpec(shape, lambda i: (0, 0),
                                pipeline_mode=pl.Buffered(1))
        return pl.BlockSpec(shape, lambda i: (0, 0))

    kernel = functools.partial(_uv_encoder_kernel, n_idx_cols=n_idx_cols)
    return pl.pallas_call(
        kernel,
        out_shape=jax.ShapeDtypeStruct((n_pad, d_pad), out_dtype),
        grid_spec=pltpu.PrefetchScalarGridSpec(
            num_scalar_prefetch=0,
            grid=(n_pad // tile,),
            in_specs=[
                pl.BlockSpec((tile, n_idx_cols), lambda i: (i, 0)),  # merged ids
                resident(table_shape),                               # fused table
                resident(bias_shape),                                # bias
            ],
            out_specs=pl.BlockSpec((tile, d_pad), lambda i: (i, 0)),
        ),
        compiler_params=pltpu.CompilerParams(
            dimension_semantics=("parallel",),
            vmem_limit_bytes=32 * 1024 * 1024),
    )


_SINGLE_BUFFER_OK = True   # flipped to False if Buffered(1) is rejected


def uv_encoder_forward(packed, nodes, history_uv, history_r, *,
                       tile_n=1024, out_dtype=jnp.bfloat16):
    """Fused forward.  nodes: [N] int, history_uv / history_r: [N, H] int."""
    global _SINGLE_BUFFER_OK
    d = packed["embed_dim"]
    table, bias = packed["table"], packed["bias"]
    k_pad, d_pad = table.shape
    n = nodes.shape[0]
    hist_len = history_uv.shape[1]
    assert hist_len == packed["hist_len"], "inv_hist folded at pack time"
    n_idx_cols = 1 + 2 * hist_len

    # One merged [N, 1+2H] int32 index matrix; history ids pre-shifted into
    # their segment of the fused table -> one DMA per grid step.
    idx = jnp.concatenate(
        [nodes.astype(jnp.int32)[:, None],
         history_uv.astype(jnp.int32) + packed["off_items"],
         history_r.astype(jnp.int32) + packed["off_rates"]], axis=1)

    # Node tile: large (grid-step-overhead bound, not VMEM bound), multiple of
    # 16 for bf16 packing.  When N is small, cap the tile at ~N/2 so the grid
    # has >= 2 steps and both v7x TensorCores get a shard.
    n16 = _round_up(max(n, 16), 16)
    tile = min(_round_up(tile_n, 16), n16)
    if tile == n16 and n16 >= 32:
        tile = _round_up(n16 // 2, 16)
    n_pad = pl.cdiv(n, tile) * tile
    idx_p = jnp.pad(idx, ((0, n_pad - n), (0, 0)))       # pad ids -> sliced off

    def run(single_buffer):
        call = _build_call(n_pad, tile, n_idx_cols, d_pad,
                           table.shape, bias.shape, out_dtype, single_buffer)
        return call(idx_p, table, bias)

    if _SINGLE_BUFFER_OK:
        try:
            out = jax.block_until_ready(run(True))
        except Exception:
            _SINGLE_BUFFER_OK = False
            out = run(False)
    else:
        out = run(False)
    return out[:n, :d]


# ----------------------------------------------------------------------------
# Pure-JAX f32 reference with identical semantics.
# ----------------------------------------------------------------------------
def _reference(params, nodes, history_uv, history_r):
    self_feats = jnp.take(params["features"], nodes, axis=0)
    neigh = jnp.take(params["item_emb"], history_uv, axis=0)
    rate = jnp.take(params["rating_emb"], history_r, axis=0)
    neigh_feats = jnp.mean(neigh + rate, axis=1)
    combined = jnp.concatenate([self_feats, neigh_feats], axis=1)
    w_full = jnp.concatenate([params["w_self"], params["w_neigh"]], axis=0)
    return jnp.maximum(combined @ w_full + params["bias"], 0.0)


if __name__ == "__main__":
    key = jax.random.PRNGKey(0)
    embed_dim = 32          # D
    num_users = 20          # features.weight rows
    num_items = 24          # aggregator neighbor table rows
    num_ratings = 5
    n_nodes = 200           # ragged batch of node ids (exercises padding)
    hist_len = 5            # fixed-length histories

    ks = jax.random.split(key, 7)
    params = {
        # features.weight  (nn.Embedding-style table)
        "features":   jax.random.normal(ks[0], (num_users, embed_dim), jnp.float32) * 0.1,
        # aggregator tables
        "item_emb":   jax.random.normal(ks[1], (num_items, embed_dim), jnp.float32) * 0.1,
        "rating_emb": jax.random.normal(ks[2], (num_ratings, embed_dim), jnp.float32) * 0.1,
        # linear1: nn.Linear(2*D, D) — weight [D, 2D] split & transposed to two [D, D]
        # (x @ w_self + x_neigh @ w_neigh == cat(x, x_neigh) @ W.T)
        "w_self":     jax.random.normal(ks[3], (embed_dim, embed_dim), jnp.float32) * 0.1,
        "w_neigh":    jax.random.normal(ks[4], (embed_dim, embed_dim), jnp.float32) * 0.1,
        "bias":       jax.random.normal(ks[5], (1, embed_dim), jnp.float32) * 0.1,
    }

    nodes = jax.random.randint(ks[6], (n_nodes,), 0, num_users)
    k_uv, k_r = jax.random.split(jax.random.PRNGKey(1))
    history_uv = jax.random.randint(k_uv, (n_nodes, hist_len), 0, num_items)
    history_r = jax.random.randint(k_r, (n_nodes, hist_len), 0, num_ratings)

    # One-time f32 fold of Linear into the tables, then a single bf16 cast.
    packed = pack_params(params, embed_dim, hist_len)

    # tile_n=64 at this toy size gives a 4-step grid (both v7x TCs get work);
    # at production N keep the default tile_n=1024.
    out = uv_encoder_forward(packed, nodes, history_uv, history_r, tile_n=64)
    out = jax.block_until_ready(out)

    ref = _reference(params, nodes, history_uv, history_r)
    assert out.shape == (n_nodes, embed_dim)
    assert jnp.allclose(out.astype(jnp.float32), ref, atol=3e-2, rtol=3e-2), \
        "mismatch vs reference"

    print("KERNEL_OK")
</pallas_src>

<mosaic_0001>
module attributes {stable_mosaic.version = 11 : i64} {
  func.func @_uv_encoder_kernel(%arg0: i32, %arg1: memref<64x11xi32, #tpu.memory_space<vmem>>, %arg2: memref<128x128xbf16, #tpu.memory_space<vmem>>, %arg3: memref<1x128xf32, #tpu.memory_space<vmem>>, %arg4: memref<64x128xbf16, #tpu.memory_space<vmem>>) attributes {dimension_semantics = [#tpu.dimension_semantics<parallel>], iteration_bounds = array<i64: 4>, scalar_prefetch = 0 : i64, scratch_operands = 0 : i64, tpu.core_type = #tpu.core_type<tc>, window_params = [{transform_indices = @transform_0, window_bounds = array<i64: 64, 11>}, {pipeline_mode = #tpu.pipeline_mode<synchronous>, transform_indices = @transform_1, window_bounds = array<i64: 128, 128>}, {pipeline_mode = #tpu.pipeline_mode<synchronous>, transform_indices = @transform_2, window_bounds = array<i64: 1, 128>}, {transform_indices = @transform_3, window_bounds = array<i64: 64, 128>}]} {
    %c0 = arith.constant 0 : index
    %c0_0 = arith.constant 0 : index
    %0 = vector.load %arg1[%c0, %c0_0] : memref<64x11xi32, #tpu.memory_space<vmem>>, vector<64x11xi32>
    %1 = tpu.iota {dimensions = array<i32: 1>} : vector<64x128xi32>
    %2 = vector.extract_strided_slice %0 {offsets = [0, 0], sizes = [64, 1], strides = [1, 1]} : vector<64x11xi32> to vector<64x1xi32>
    %3 = vector.broadcast %2 : vector<64x1xi32> to vector<64x128xi32>
    %4 = arith.cmpi eq, %3, %1 : vector<64x128xi32>
    %5 = arith.extui %4 : vector<64x128xi1> to vector<64x128xi32>
    %6 = arith.sitofp %5 : vector<64x128xi32> to vector<64x128xf32>
    %7 = arith.truncf %6 : vector<64x128xf32> to vector<64x128xbf16>
    %8 = vector.extract_strided_slice %0 {offsets = [0, 1], sizes = [64, 1], strides = [1, 1]} : vector<64x11xi32> to vector<64x1xi32>
    %9 = vector.broadcast %8 : vector<64x1xi32> to vector<64x128xi32>
    %10 = arith.cmpi eq, %9, %1 : vector<64x128xi32>
    %11 = arith.extui %10 : vector<64x128xi1> to vector<64x128xi32>
    %12 = arith.sitofp %11 : vector<64x128xi32> to vector<64x128xf32>
    %13 = arith.truncf %12 : vector<64x128xf32> to vector<64x128xbf16>
    %14 = arith.addf %7, %13 : vector<64x128xbf16>
    %15 = vector.extract_strided_slice %0 {offsets = [0, 2], sizes = [64, 1], strides = [1, 1]} : vector<64x11xi32> to vector<64x1xi32>
    %16 = vector.broadcast %15 : vector<64x1xi32> to vector<64x128xi32>
    %17 = arith.cmpi eq, %16, %1 : vector<64x128xi32>
    %18 = arith.extui %17 : vector<64x128xi1> to vector<64x128xi32>
    %19 = arith.sitofp %18 : vector<64x128xi32> to vector<64x128xf32>
    %20 = arith.truncf %19 : vector<64x128xf32> to vector<64x128xbf16>
    %21 = arith.addf %14, %20 : vector<64x128xbf16>
    %22 = vector.extract_strided_slice %0 {offsets = [0, 3], sizes = [64, 1], strides = [1, 1]} : vector<64x11xi32> to vector<64x1xi32>
    %23 = vector.broadcast %22 : vector<64x1xi32> to vector<64x128xi32>
    %24 = arith.cmpi eq, %23, %1 : vector<64x128xi32>
    %25 = arith.extui %24 : vector<64x128xi1> to vector<64x128xi32>
    %26 = arith.sitofp %25 : vector<64x128xi32> to vector<64x128xf32>
    %27 = arith.truncf %26 : vector<64x128xf32> to vector<64x128xbf16>
    %28 = arith.addf %21, %27 : vector<64x128xbf16>
    %29 = vector.extract_strided_slice %0 {offsets = [0, 4], sizes = [64, 1], strides = [1, 1]} : vector<64x11xi32> to vector<64x1xi32>
    %30 = vector.broadcast %29 : vector<64x1xi32> to vector<64x128xi32>
    %31 = arith.cmpi eq, %30, %1 : vector<64x128xi32>
    %32 = arith.extui %31 : vector<64x128xi1> to vector<64x128xi32>
    %33 = arith.sitofp %32 : vector<64x128xi32> to vector<64x128xf32>
    %34 = arith.truncf %33 : vector<64x128xf32> to vector<64x128xbf16>
    %35 = arith.addf %28, %34 : vector<64x128xbf16>
    %36 = vector.extract_strided_slice %0 {offsets = [0, 5], sizes = [64, 1], strides = [1, 1]} : vector<64x11xi32> to vector<64x1xi32>
    %37 = vector.broadcast %36 : vector<64x1xi32> to vector<64x128xi32>
    %38 = arith.cmpi eq, %37, %1 : vector<64x128xi32>
    %39 = arith.extui %38 : vector<64x128xi1> to vector<64x128xi32>
    %40 = arith.sitofp %39 : vector<64x128xi32> to vector<64x128xf32>
    %41 = arith.truncf %40 : vector<64x128xf32> to vector<64x128xbf16>
    %42 = arith.addf %35, %41 : vector<64x128xbf16>
    %43 = vector.extract_strided_slice %0 {offsets = [0, 6], sizes = [64, 1], strides = [1, 1]} : vector<64x11xi32> to vector<64x1xi32>
    %44 = vector.broadcast %43 : vector<64x1xi32> to vector<64x128xi32>
    %45 = arith.cmpi eq, %44, %1 : vector<64x128xi32>
    %46 = arith.extui %45 : vector<64x128xi1> to vector<64x128xi32>
    %47 = arith.sitofp %46 : vector<64x128xi32> to vector<64x128xf32>
    %48 = arith.truncf %47 : vector<64x128xf32> to vector<64x128xbf16>
    %49 = arith.addf %42, %48 : vector<64x128xbf16>
    %50 = vector.extract_strided_slice %0 {offsets = [0, 7], sizes = [64, 1], strides = [1, 1]} : vector<64x11xi32> to vector<64x1xi32>
    %51 = vector.broadcast %50 : vector<64x1xi32> to vector<64x128xi32>
    %52 = arith.cmpi eq, %51, %1 : vector<64x128xi32>
    %53 = arith.extui %52 : vector<64x128xi1> to vector<64x128xi32>
    %54 = arith.sitofp %53 : vector<64x128xi32> to vector<64x128xf32>
    %55 = arith.truncf %54 : vector<64x128xf32> to vector<64x128xbf16>
    %56 = arith.addf %49, %55 : vector<64x128xbf16>
    %57 = vector.extract_strided_slice %0 {offsets = [0, 8], sizes = [64, 1], strides = [1, 1]} : vector<64x11xi32> to vector<64x1xi32>
    %58 = vector.broadcast %57 : vector<64x1xi32> to vector<64x128xi32>
    %59 = arith.cmpi eq, %58, %1 : vector<64x128xi32>
    %60 = arith.extui %59 : vector<64x128xi1> to vector<64x128xi32>
    %61 = arith.sitofp %60 : vector<64x128xi32> to vector<64x128xf32>
    %62 = arith.truncf %61 : vector<64x128xf32> to vector<64x128xbf16>
    %63 = arith.addf %56, %62 : vector<64x128xbf16>
    %64 = vector.extract_strided_slice %0 {offsets = [0, 9], sizes = [64, 1], strides = [1, 1]} : vector<64x11xi32> to vector<64x1xi32>
    %65 = vector.broadcast %64 : vector<64x1xi32> to vector<64x128xi32>
    %66 = arith.cmpi eq, %65, %1 : vector<64x128xi32>
    %67 = arith.extui %66 : vector<64x128xi1> to vector<64x128xi32>
    %68 = arith.sitofp %67 : vector<64x128xi32> to vector<64x128xf32>
    %69 = arith.truncf %68 : vector<64x128xf32> to vector<64x128xbf16>
    %70 = arith.addf %63, %69 : vector<64x128xbf16>
    %71 = vector.extract_strided_slice %0 {offsets = [0, 10], sizes = [64, 1], strides = [1, 1]} : vector<64x11xi32> to vector<64x1xi32>
    %72 = vector.broadcast %71 : vector<64x1xi32> to vector<64x128xi32>
    %73 = arith.cmpi eq, %72, %1 : vector<64x128xi32>
    %74 = arith.extui %73 : vector<64x128xi1> to vector<64x128xi32>
    %75 = arith.sitofp %74 : vector<64x128xi32> to vector<64x128xf32>
    %76 = arith.truncf %75 : vector<64x128xf32> to vector<64x128xbf16>
    %77 = arith.addf %70, %76 : vector<64x128xbf16>
    %c0_1 = arith.constant 0 : index
    %c0_2 = arith.constant 0 : index
    %78 = vector.load %arg2[%c0_1, %c0_2] : memref<128x128xbf16, #tpu.memory_space<vmem>>, vector<128x128xbf16>
    %cst = arith.constant dense<0.000000e+00> : vector<64x128xf32>
    %79 = tpu.matmul %77, %78, %cst {dimension_numbers = #tpu.dot_dimension_numbers<[1], [0], [0], [1], [0, 0, 1, 1], [], []>} : vector<64x128xbf16>, vector<128x128xbf16>, vector<64x128xf32> -> vector<64x128xf32>
    %c0_3 = arith.constant 0 : index
    %c0_4 = arith.constant 0 : index
    %80 = vector.load %arg3[%c0_3, %c0_4] : memref<1x128xf32, #tpu.memory_space<vmem>>, vector<1x128xf32>
    %81 = vector.broadcast %80 : vector<1x128xf32> to vector<64x128xf32>
    %82 = arith.addf %79, %81 : vector<64x128xf32>
    %cst_5 = arith.constant 0.000000e+00 : f32
    %83 = vector.broadcast %cst_5 : f32 to vector<64x128xf32>
    %84 = arith.maximumf %82, %83 : vector<64x128xf32>
    %85 = arith.truncf %84 : vector<64x128xf32> to vector<64x128xbf16>
    %c0_6 = arith.constant 0 : index
    %c0_7 = arith.constant 0 : index
    %86 = vector.load %arg4[%c0_6, %c0_7] : memref<64x128xbf16, #tpu.memory_space<vmem>>, vector<64x128xbf16>
    tpu.vector_store %arg4[%c0_6, %c0_7], %85 {strides = array<i32>} : memref<64x128xbf16, #tpu.memory_space<vmem>>, vector<64x128xbf16>,
    return
  }
  func.func @transform_0(%arg0: i32) -> (i32, i32) {
    %c0_i32 = arith.constant 0 : i32
    %c0_i32_0 = arith.constant 0 : i32
    return %arg0, %c0_i32 : i32, i32
  }
  func.func @transform_1(%arg0: i32) -> (i32, i32) {
    %c0_i32 = arith.constant 0 : i32
    %c0_i32_0 = arith.constant 0 : i32
    %c0_i32_1 = arith.constant 0 : i32
    return %c0_i32, %c0_i32_0 : i32, i32
  }
  func.func @transform_2(%arg0: i32) -> (i32, i32) {
    %c0_i32 = arith.constant 0 : i32
    %c0_i32_0 = arith.constant 0 : i32
    %c0_i32_1 = arith.constant 0 : i32
    return %c0_i32, %c0_i32_0 : i32, i32
  }
  func.func @transform_3(%arg0: i32) -> (i32, i32) {
    %c0_i32 = arith.constant 0 : i32
    %c0_i32_0 = arith.constant 0 : i32
    return %arg0, %c0_i32 : i32, i32
  }
}

module attributes {stable_mosaic.version = 11 : i64} {
  func.func @_uv_encoder_kernel(%arg0: i32, %arg1: memref<64x11xi32, #tpu.memory_space<vmem>>, %arg2: memref<128x128xbf16, #tpu.memory_space<vmem>>, %arg3: memref<1x128xf32, #tpu.memory_space<vmem>>, %arg4: memref<64x128xbf16, #tpu.memory_space<vmem>>) attributes {dimension_semantics = [#tpu.dimension_semantics<parallel>], iteration_bounds = array<i64: 4>, scalar_prefetch = 0 : i64, scratch_operands = 0 : i64, tpu.core_type = #tpu.core_type<tc>, window_params = [{transform_indices = @transform_0, window_bounds = array<i64: 64, 11>}, {pipeline_mode = #tpu.pipeline_mode<synchronous>, transform_indices = @transform_1, window_bounds = array<i64: 128, 128>}, {pipeline_mode = #tpu.pipeline_mode<synchronous>, transform_indices = @transform_2, window_bounds = array<i64: 1, 128>}, {transform_indices = @transform_3, window_bounds = array<i64: 64, 128>}]} {
    %c0 = arith.constant 0 : index
    %c0_0 = arith.constant 0 : index
    %0 = vector.load %arg1[%c0, %c0_0] : memref<64x11xi32, #tpu.memory_space<vmem>>, vector<64x11xi32>
    %1 = tpu.iota {dimensions = array<i32: 1>} : vector<64x128xi32>
    %2 = vector.extract_strided_slice %0 {offsets = [0, 0], sizes = [64, 1], strides = [1, 1]} : vector<64x11xi32> to vector<64x1xi32>
    %3 = vector.broadcast %2 : vector<64x1xi32> to vector<64x128xi32>
    %4 = arith.cmpi eq, %3, %1 : vector<64x128xi32>
    %5 = arith.extui %4 : vector<64x128xi1> to vector<64x128xi32>
    %6 = arith.sitofp %5 : vector<64x128xi32> to vector<64x128xf32>
    %7 = arith.truncf %6 : vector<64x128xf32> to vector<64x128xbf16>
    %8 = vector.extract_strided_slice %0 {offsets = [0, 1], sizes = [64, 1], strides = [1, 1]} : vector<64x11xi32> to vector<64x1xi32>
    %9 = vector.broadcast %8 : vector<64x1xi32> to vector<64x128xi32>
    %10 = arith.cmpi eq, %9, %1 : vector<64x128xi32>
    %11 = arith.extui %10 : vector<64x128xi1> to vector<64x128xi32>
    %12 = arith.sitofp %11 : vector<64x128xi32> to vector<64x128xf32>
    %13 = arith.truncf %12 : vector<64x128xf32> to vector<64x128xbf16>
    %14 = arith.addf %7, %13 : vector<64x128xbf16>
    %15 = vector.extract_strided_slice %0 {offsets = [0, 2], sizes = [64, 1], strides = [1, 1]} : vector<64x11xi32> to vector<64x1xi32>
    %16 = vector.broadcast %15 : vector<64x1xi32> to vector<64x128xi32>
    %17 = arith.cmpi eq, %16, %1 : vector<64x128xi32>
    %18 = arith.extui %17 : vector<64x128xi1> to vector<64x128xi32>
    %19 = arith.sitofp %18 : vector<64x128xi32> to vector<64x128xf32>
    %20 = arith.truncf %19 : vector<64x128xf32> to vector<64x128xbf16>
    %21 = arith.addf %14, %20 : vector<64x128xbf16>
    %22 = vector.extract_strided_slice %0 {offsets = [0, 3], sizes = [64, 1], strides = [1, 1]} : vector<64x11xi32> to vector<64x1xi32>
    %23 = vector.broadcast %22 : vector<64x1xi32> to vector<64x128xi32>
    %24 = arith.cmpi eq, %23, %1 : vector<64x128xi32>
    %25 = arith.extui %24 : vector<64x128xi1> to vector<64x128xi32>
    %26 = arith.sitofp %25 : vector<64x128xi32> to vector<64x128xf32>
    %27 = arith.truncf %26 : vector<64x128xf32> to vector<64x128xbf16>
    %28 = arith.addf %21, %27 : vector<64x128xbf16>
    %29 = vector.extract_strided_slice %0 {offsets = [0, 4], sizes = [64, 1], strides = [1, 1]} : vector<64x11xi32> to vector<64x1xi32>
    %30 = vector.broadcast %29 : vector<64x1xi32> to vector<64x128xi32>
    %31 = arith.cmpi eq, %30, %1 : vector<64x128xi32>
    %32 = arith.extui %31 : vector<64x128xi1> to vector<64x128xi32>
    %33 = arith.sitofp %32 : vector<64x128xi32> to vector<64x128xf32>
    %34 = arith.truncf %33 : vector<64x128xf32> to vector<64x128xbf16>
    %35 = arith.addf %28, %34 : vector<64x128xbf16>
    %36 = vector.extract_strided_slice %0 {offsets = [0, 5], sizes = [64, 1], strides = [1, 1]} : vector<64x11xi32> to vector<64x1xi32>
    %37 = vector.broadcast %36 : vector<64x1xi32> to vector<64x128xi32>
    %38 = arith.cmpi eq, %37, %1 : vector<64x128xi32>
    %39 = arith.extui %38 : vector<64x128xi1> to vector<64x128xi32>
    %40 = arith.sitofp %39 : vector<64x128xi32> to vector<64x128xf32>
    %41 = arith.truncf %40 : vector<64x128xf32> to vector<64x128xbf16>
    %42 = arith.addf %35, %41 : vector<64x128xbf16>
    %43 = vector.extract_strided_slice %0 {offsets = [0, 6], sizes = [64, 1], strides = [1, 1]} : vector<64x11xi32> to vector<64x1xi32>
    %44 = vector.broadcast %43 : vector<64x1xi32> to vector<64x128xi32>
    %45 = arith.cmpi eq, %44, %1 : vector<64x128xi32>
    %46 = arith.extui %45 : vector<64x128xi1> to vector<64x128xi32>
    %47 = arith.sitofp %46 : vector<64x128xi32> to vector<64x128xf32>
    %48 = arith.truncf %47 : vector<64x128xf32> to vector<64x128xbf16>
    %49 = arith.addf %42, %48 : vector<64x128xbf16>
    %50 = vector.extract_strided_slice %0 {offsets = [0, 7], sizes = [64, 1], strides = [1, 1]} : vector<64x11xi32> to vector<64x1xi32>
    %51 = vector.broadcast %50 : vector<64x1xi32> to vector<64x128xi32>
    %52 = arith.cmpi eq, %51, %1 : vector<64x128xi32>
    %53 = arith.extui %52 : vector<64x128xi1> to vector<64x128xi32>
    %54 = arith.sitofp %53 : vector<64x128xi32> to vector<64x128xf32>
    %55 = arith.truncf %54 : vector<64x128xf32> to vector<64x128xbf16>
    %56 = arith.addf %49, %55 : vector<64x128xbf16>
    %57 = vector.extract_strided_slice %0 {offsets = [0, 8], sizes = [64, 1], strides = [1, 1]} : vector<64x11xi32> to vector<64x1xi32>
    %58 = vector.broadcast %57 : vector<64x1xi32> to vector<64x128xi32>
    %59 = arith.cmpi eq, %58, %1 : vector<64x128xi32>
    %60 = arith.extui %59 : vector<64x128xi1> to vector<64x128xi32>
    %61 = arith.sitofp %60 : vector<64x128xi32> to vector<64x128xf32>
    %62 = arith.truncf %61 : vector<64x128xf32> to vector<64x128xbf16>
    %63 = arith.addf %56, %62 : vector<64x128xbf16>
    %64 = vector.extract_strided_slice %0 {offsets = [0, 9], sizes = [64, 1], strides = [1, 1]} : vector<64x11xi32> to vector<64x1xi32>
    %65 = vector.broadcast %64 : vector<64x1xi32> to vector<64x128xi32>
    %66 = arith.cmpi eq, %65, %1 : vector<64x128xi32>
    %67 = arith.extui %66 : vector<64x128xi1> to vector<64x128xi32>
    %68 = arith.sitofp %67 : vector<64x128xi32> to vector<64x128xf32>
    %69 = arith.truncf %68 : vector<64x128xf32> to vector<64x128xbf16>
    %70 = arith.addf %63, %69 : vector<64x128xbf16>
    %71 = vector.extract_strided_slice %0 {offsets = [0, 10], sizes = [64, 1], strides = [1, 1]} : vector<64x11xi32> to vector<64x1xi32>
    %72 = vector.broadcast %71 : vector<64x1xi32> to vector<64x128xi32>
    %73 = arith.cmpi eq, %72, %1 : vector<64x128xi32>
    %74 = arith.extui %73 : vector<64x128xi1> to vector<64x128xi32>
    %75 = arith.sitofp %74 : vector<64x128xi32> to vector<64x128xf32>
    %76 = arith.truncf %75 : vector<64x128xf32> to vector<64x128xbf16>
    %77 = arith.addf %70, %76 : vector<64x128xbf16>
    %c0_1 = arith.constant 0 : index
    %c0_2 = arith.constant 0 : index
    %78 = vector.load %arg2[%c0_1, %c0_2] : memref<128x128xbf16, #tpu.memory_space<vmem>>, vector<128x128xbf16>
    %cst = arith.constant dense<0.000000e+00> : vector<64x128xf32>
    %79 = tpu.matmul %77, %78, %cst {dimension_numbers = #tpu.dot_dimension_numbers<[1], [0], [0], [1], [0, 0, 1, 1], [], []>} : vector<64x128xbf16>, vector<128x128xbf16>, vector<64x128xf32> -> vector<64x128xf32>
    %c0_3 = arith.constant 0 : index
    %c0_4 = arith.constant 0 : index
    %80 = vector.load %arg3[%c0_3, %c0_4] : memref<1x128xf32, #tpu.memory_space<vmem>>, vector<1x128xf32>
    %81 = vector.broadcast %80 : vector<1x128xf32> to vector<64x128xf32>
    %82 = arith.addf %79, %81 : vector<64x128xf32>
    %cst_5 = arith.constant 0.000000e+00 : f32
    %83 = vector.broadcast %cst_5 : f32 to vector<64x128xf32>
    %84 = arith.maximumf %82, %83 : vector<64x128xf32>
    %85 = arith.truncf %84 : vector<64x128xf32> to vector<64x128xbf16>
    %c0_6 = arith.constant 0 : index
    %c0_7 = arith.constant 0 : index
    %86 = vector.load %arg4[%c0_6, %c0_7] : memref<64x128xbf16, #tpu.memory_space<vmem>>, vector<64x128xbf16>
    tpu.vector_store %arg4[%c0_6, %c0_7], %85 {strides = array<i32>} : memref<64x128xbf16, #tpu.memory_space<vmem>>, vector<64x128xbf16>,
    return
  }
  func.func @transform_0(%arg0: i32) -> (i32, i32) {
    %c0_i32 = arith.constant 0 : i32
    %c0_i32_0 = arith.constant 0 : i32
    return %arg0, %c0_i32 : i32, i32
  }
  func.func @transform_1(%arg0: i32) -> (i32, i32) {
    %c0_i32 = arith.constant 0 : i32
    %c0_i32_0 = arith.constant 0 : i32
    %c0_i32_1 = arith.constant 0 : i32
    return %c0_i32, %c0_i32_0 : i32, i32
  }
  func.func @transform_2(%arg0: i32) -> (i32, i32) {
    %c0_i32 = arith.constant 0 : i32
    %c0_i32_0 = arith.constant 0 : i32
    %c0_i32_1 = arith.constant 0 : i32
    return %c0_i32, %c0_i32_0 : i32, i32
  }
  func.func @transform_3(%arg0: i32) -> (i32, i32) {
    %c0_i32 = arith.constant 0 : i32
    %c0_i32_0 = arith.constant 0 : i32
    return %arg0, %c0_i32 : i32, i32
  }
}

</mosaic_0001>

<llo_original>
// kernel: tpu_custom_call.1
$region0: #{tpu_custom_call.1}
  #allocation0 [shape = 'u32[]', space=smem, size = 0x4, offset = 0x4, fixed_abs, tag = 'smem constant byte address 0x4 - core index']
  #allocation1 [shape = 'u32[144,128]{1,0:T(1,128)}', space=vmem, size = 0x12000, scoped, tag = 'internal scratch']
  %s0 = inlined_call_operand.vmem [shape: s32[256,11], index: 0, kind: input, shape index: {}]
  %s1 = inlined_call_operand.vmem [shape: bf16[128,128], index: 1, kind: input, shape index: {}]
  %s2 = inlined_call_operand.vmem [shape: f32[1,128], index: 2, kind: input, shape index: {}]
  %s3 = inlined_call_operand.hbm [shape: bf16[256,128], index: 3, kind: output, shape index: {}]
  %s4 = sld [smem:[#allocation0]]
  $region45: #{tpu_custom_call.1} parent=0
    _
  %s6 = ssub.s32 1, %s4
  %s7 = scalar_select 0, %s6, %s4
  $region1: #{tpu_custom_call.1} parent=0
    #allocation2 [shape = 'u8[32768]{0}', space=vmem, size = 0x8000, scoped, tag = 'output window, operand 0']
    #allocation3 [shape = 's32[2]{0}', space=sflag, size = 0x8, scoped, tag = 'scoped memory for tpu_custom_call.1']
    %8 = vsyncpa [#allocation3], 0
    %s9 = scalar_lea.sflag [#allocation3], 1
    %10 = vsyncpa %s9, 0
    loop: start=0, step=1, limit=6
    $region2: #{tpu_custom_call.1} parent=1 // loop_pre_header
      _
    $region3: #{tpu_custom_call.1} parent=1 // loop_header
      %s12 = sphi 0, %s16
      %p13 = scmp.ge.s32.totalorder %s12, 6
      %s22 = sphi 0, %s24
      %s25 = sphi 0, %s22
      %s26 = sphi 0, %s25
      %s42 = sphi 0, %s26
      %s46 = sphi 0, %s46
      %s48 = sphi 0, %s46
      %s49 = sphi 0, %s48
      %s63 = sphi 0, %s49
      %s67 = sphi 0, %s67
      %s69 = sphi 0, %s67
      %s70 = sphi 0, %s69
      %s84 = sphi 0, %s70
      %s90 = sphi 0, %s92
      %s93 = sphi 0, %s90
      %s94 = sphi 0, %s93
      %s110 = sphi 0, %s94
    $region4: #{tpu_custom_call.1} parent=1 // loop_header_branch
      %15 = sbr.rel (%p13) target = $region8
    $region5: #{tpu_custom_call.1} parent=1 // loop_body
      %s17 = ssub.s32 %s12, 1
      %s18 = ssub.s32 %s12, 2
      %s19 = sadd.s32 %s12, 1
      %s20 = ssub.s32 %s12, %s19
      %p21 = scmp.eq.s32.totalorder %s20, 0
      %s23 = sadd.s32 %s22, 1
      %s24 = scalar_select %p21, %s22, %s23
      %p27 = pneg %p21
      %p28 = scmp.eq.s32.totalorder %s12, 3
      %p29 = por %p27, %p28
      %p30 = scmp.ne.s32.totalorder %s22, %s25
      %p31 = scmp.eq.s32.totalorder %s12, 0
      %p32 = por %p30, %p31
      %p33 = scmp.ne.s32.totalorder %s22, %s25
      %p34 = scmp.eq.s32.totalorder %s17, 3
      %p35 = por %p33, %p34
      %p36 = scmp.ne.s32.totalorder %s25, %s26
      %p37 = scmp.eq.s32.totalorder %s17, 0
      %p38 = por %p36, %p37
      %p39 = scmp.ne.s32.totalorder %s25, %s26
      %p40 = scmp.eq.s32.totalorder %s18, 3
      %p41 = por %p39, %p40
      %p43 = scmp.ne.s32.totalorder %s26, %s42
      %p44 = scmp.eq.s32.totalorder %s18, 0
      %p45 = por %p43, %p44
      %s47 = sadd.s32 %s46, 1
      %p50 = scmp.eq.s32.totalorder %s12, 3
      %p51 = scmp.ne.s32.totalorder %s46, %s48
      %p52 = scmp.eq.s32.totalorder %s12, 0
      %p53 = por %p51, %p52
      %p54 = scmp.ne.s32.totalorder %s46, %s48
      %p55 = scmp.eq.s32.totalorder %s17, 3
      %p56 = por %p54, %p55
      %p57 = scmp.ne.s32.totalorder %s48, %s49
      %p58 = scmp.eq.s32.totalorder %s17, 0
      %p59 = por %p57, %p58
      %p60 = scmp.ne.s32.totalorder %s48, %s49
      %p61 = scmp.eq.s32.totalorder %s18, 3
      %p62 = por %p60, %p61
      %p64 = scmp.ne.s32.totalorder %s49, %s63
      %p65 = scmp.eq.s32.totalorder %s18, 0
      %p66 = por %p64, %p65
      %s68 = sadd.s32 %s67, 1
      %p71 = scmp.eq.s32.totalorder %s12, 3
      %p72 = scmp.ne.s32.totalorder %s67, %s69
      %p73 = scmp.eq.s32.totalorder %s12, 0
      %p74 = por %p72, %p73
      %p75 = scmp.ne.s32.totalorder %s67, %s69
      %p76 = scmp.eq.s32.totalorder %s17, 3
      %p77 = por %p75, %p76
      %p78 = scmp.ne.s32.totalorder %s69, %s70
      %p79 = scmp.eq.s32.totalorder %s17, 0
      %p80 = por %p78, %p79
      %p81 = scmp.ne.s32.totalorder %s69, %s70
      %p82 = scmp.eq.s32.totalorder %s18, 3
      %p83 = por %p81, %p82
      %p85 = scmp.ne.s32.totalorder %s70, %s84
      %p86 = scmp.eq.s32.totalorder %s18, 0
      %p87 = por %p85, %p86
      %s88 = ssub.s32 %s12, %s19
      %p89 = scmp.eq.s32.totalorder %s88, 0
      %s91 = sadd.s32 %s90, 1
      %s92 = scalar_select %p89, %s90, %s91
      %p95 = pneg %p89
      %p96 = scmp.eq.s32.totalorder %s12, 3
      %p97 = por %p95, %p96
      %p98 = scmp.ne.s32.totalorder %s90, %s93
      %p99 = scmp.eq.s32.totalorder %s12, 0
      %p100 = por %p98, %p99
      %p101 = scmp.ne.s32.totalorder %s90, %s93
      %p102 = scmp.eq.s32.totalorder %s17, 3
      %p103 = por %p101, %p102
      %p104 = scmp.ne.s32.totalorder %s93, %s94
      %p105 = scmp.eq.s32.totalorder %s17, 0
      %p106 = por %p104, %p105
      %p107 = scmp.ne.s32.totalorder %s93, %s94
      %p108 = scmp.eq.s32.totalorder %s18, 3
      %p109 = por %p107, %p108
      %p111 = scmp.ne.s32.totalorder %s94, %s110
      %p112 = scmp.eq.s32.totalorder %s18, 0
      %p113 = por %p111, %p112
      %p114 = scmp.le.s32.totalorder 1, %s12
      %p115 = scmp.lt.s32.totalorder %s12, 5
      %p116 = pnand %p114, %p115
      %p117 = pneg %p116
      // Predicated region
      $region9: #{tpu_custom_call.1} parent=5 // pred_check
        _
      $region10: #{tpu_custom_call.1} parent=5 // pred_check_branch
        %119 = sbr.rel (%p116) target = $region12
      $region11: #{tpu_custom_call.1} parent=5 // pred_region
        %s120 = ssub.s32 %s12, 1
        // Predicated region
        $region13: #{tpu_custom_call.1} parent=11 // pred_check
          %p121 = pneg %p59
        $region14: #{tpu_custom_call.1} parent=11 // pred_check_branch
          %123 = sbr.rel (%p121) target = $region16
        $region15: #{tpu_custom_call.1} parent=11 // pred_region
          _
        $region16: #{tpu_custom_call.1} parent=11 // pred_fallthru
          _
        // Predicated region
        $region17: #{tpu_custom_call.1} parent=11 // pred_check
          %p124 = pneg %p80
        $region18: #{tpu_custom_call.1} parent=11 // pred_check_branch
          %126 = sbr.rel (%p124) target = $region20
        $region19: #{tpu_custom_call.1} parent=11 // pred_region
          _
        $region20: #{tpu_custom_call.1} parent=11 // pred_fallthru
          _
      $region12: #{tpu_custom_call.1} parent=5 // pred_fallthru
        _
      %p127 = scmp.lt.s32.totalorder %s12, 4
      // Predicated region
      $region21: #{tpu_custom_call.1} parent=5 // pred_check
        %p128 = pneg %p127
      $region22: #{tpu_custom_call.1} parent=5 // pred_check_branch
        %130 = sbr.rel (%p128) target = $region24
      $region23: #{tpu_custom_call.1} parent=5 // pred_region
        // Predicated region
        $region25: #{tpu_custom_call.1} parent=23 // pred_check
          %p131 = pneg %p32
        $region26: #{tpu_custom_call.1} parent=23 // pred_check_branch
          %133 = sbr.rel (%p131) target = $region28
        $region27: #{tpu_custom_call.1} parent=23 // pred_region
          %s134 = smul.u32 8, %s12
          %p135 = scmp.lt.s32.totalorder %s134, 31
          %s136 = scalar_select %p135, %s134, 31
          %s137 = smul.addr %s136, 8
          %s138 = scalar_lea.vmem %s0, %s137
          %s139 = smul.u32 8, %s12
        $region28: #{tpu_custom_call.1} parent=23 // pred_fallthru
          _
      $region24: #{tpu_custom_call.1} parent=5 // pred_fallthru
        _
      %p140 = scmp.le.s32.totalorder 1, %s12
      %p141 = scmp.lt.s32.totalorder %s12, 5
      %p142 = pnand %p140, %p141
      %p143 = pneg %p142
      // Predicated region
      $region29: #{tpu_custom_call.1} parent=5 // pred_check
        _
      $region30: #{tpu_custom_call.1} parent=5 // pred_check_branch
        %145 = sbr.rel (%p142) target = $region32
      $region31: #{tpu_custom_call.1} parent=5 // pred_region
        %s146 = ssub.s32 %s12, 1
        %s147 = smul.u32 8, %s17
        %p148 = scmp.lt.s32.totalorder %s147, 31
        %s149 = scalar_select %p148, %s147, 31
        %s150 = smul.addr %s149, 8
        %s151 = scalar_lea.vmem %s0, %s150
        %p152 = pneg %p38
        %p153 = pneg %p35
        %p154 = pneg %p59
        %p155 = pneg %p56
        %p156 = pneg %p80
        %p157 = pneg %p77
        %p158 = pneg %p106
        %p159 = pneg %p103
        %s160 = sand.u32 %s93, 1
        %s161 = scalar_lea.sflag [#allocation3], %s160
        %s162 = sand.u32 %s93, 1
        %s163 = smul.addr %s162, 32
        %s164 = scalar_lea.vmem [#allocation2], %s163
        %s165 = smul.u32 8, %s17
        %p166 = scmp.lt.s32.totalorder %s165, 31
        %s167 = scalar_select %p166, %s165, 31
        %s168 = smul.addr %s167, 8
        %s169 = scalar_lea.vmem %s0, %s168
        %s170 = smul.u32 8, %s17
        %s171 = smul.u32 8, %s17
        %v173 = vld [vmem:[%s169] sm:$0xff]
        %v174 = vld [vmem:[%s169 + $0x8] sm:$0xff]
        %v175 = vld [vmem:[%s169 + $0x10] sm:$0xff]
        %v176 = vld [vmem:[%s169 + $0x18] sm:$0xff]
        %v177 = vld [vmem:[%s169 + $0x20] sm:$0xff]
        %v178 = vld [vmem:[%s169 + $0x28] sm:$0xff]
        %v179 = vld [vmem:[%s169 + $0x30] sm:$0xff]
        %v180 = vld [vmem:[%s169 + $0x38] sm:$0xff]
        %v181 = vlaneseq
        %v182 = vand.u32 %v181, 127
        %183 = vset.pattern.permute.xlu0 0
        %184 = vperm.xlu0 %183, %v173
        %v185 = vpop.permute.xlu0 %184
        %186 = vset.pattern.permute.xlu0 0
        %187 = vperm.xlu0 %186, %v174
        %v188 = vpop.permute.xlu0 %187
        %189 = vset.pattern.permute.xlu0 0
        %190 = vperm.xlu0 %189, %v175
        %v191 = vpop.permute.xlu0 %190
        %192 = vset.pattern.permute.xlu0 0
        %193 = vperm.xlu0 %192, %v176
        %v194 = vpop.permute.xlu0 %193
        %195 = vset.pattern.permute.xlu0 0
        %196 = vperm.xlu0 %195, %v177
        %v197 = vpop.permute.xlu0 %196
        %198 = vset.pattern.permute.xlu0 0
        %199 = vperm.xlu0 %198, %v178
        %v200 = vpop.permute.xlu0 %199
        %201 = vset.pattern.permute.xlu0 0
        %202 = vperm.xlu0 %201, %v179
        %v203 = vpop.permute.xlu0 %202
        %204 = vset.pattern.permute.xlu0 0
        %205 = vperm.xlu0 %204, %v180
        %v206 = vpop.permute.xlu0 %205
        %vm207 = vcmp.eq.s32.totalorder %v185, %v182
        %vm208 = vcmp.eq.s32.totalorder %v188, %v182
        %vm209 = vcmp.eq.s32.totalorder %v191, %v182
        %vm210 = vcmp.eq.s32.totalorder %v194, %v182
        %vm211 = vcmp.eq.s32.totalorder %v197, %v182
        %vm212 = vcmp.eq.s32.totalorder %v200, %v182
        %vm213 = vcmp.eq.s32.totalorder %v203, %v182
        %vm214 = vcmp.eq.s32.totalorder %v206, %v182
        %v215 = vsel %vm207, 1, 0
        %v216 = vsel %vm208, 1, 0
        %v217 = vsel %vm209, 1, 0
        %v218 = vsel %vm210, 1, 0
        %v219 = vsel %vm211, 1, 0
        %v220 = vsel %vm212, 1, 0
        %v221 = vsel %vm213, 1, 0
        %v222 = vsel %vm214, 1, 0
        %v223 = vcvt.s32.f32 %v215
        %v224 = vcvt.s32.f32 %v216
        %v225 = vcvt.s32.f32 %v217
        %v226 = vcvt.s32.f32 %v218
        %v227 = vcvt.s32.f32 %v219
        %v228 = vcvt.s32.f32 %v220
        %v229 = vcvt.s32.f32 %v221
        %v230 = vcvt.s32.f32 %v222
        %v231 = vpack.c.bf16 %v224, %v223
        %v232 = vpack.c.bf16 %v226, %v225
        %v233 = vpack.c.bf16 %v228, %v227
        %v234 = vpack.c.bf16 %v230, %v229
        %235 = vset.pattern.permute.xlu0 1
        %236 = vperm.xlu0 %235, %v173
        %v237 = vpop.permute.xlu0 %236
        %238 = vset.pattern.permute.xlu0 1
        %239 = vperm.xlu0 %238, %v174
        %v240 = vpop.permute.xlu0 %239
        %241 = vset.pattern.permute.xlu0 1
        %242 = vperm.xlu0 %241, %v175
        %v243 = vpop.permute.xlu0 %242
        %244 = vset.pattern.permute.xlu0 1
        %245 = vperm.xlu0 %244, %v176
        %v246 = vpop.permute.xlu0 %245
        %247 = vset.pattern.permute.xlu0 1
        %248 = vperm.xlu0 %247, %v177
        %v249 = vpop.permute.xlu0 %248
        %250 = vset.pattern.permute.xlu0 1
        %251 = vperm.xlu0 %250, %v178
        %v252 = vpop.permute.xlu0 %251
        %253 = vset.pattern.permute.xlu0 1
        %254 = vperm.xlu0 %253, %v179
        %v255 = vpop.permute.xlu0 %254
        %256 = vset.pattern.permute.xlu0 1
        %257 = vperm.xlu0 %256, %v180
        %v258 = vpop.permute.xlu0 %257
        %vm259 = vcmp.eq.s32.totalorder %v237, %v182
        %vm260 = vcmp.eq.s32.totalorder %v240, %v182
        %vm261 = vcmp.eq.s32.totalorder %v243, %v182
        %vm262 = vcmp.eq.s32.totalorder %v246, %v182
        %vm263 = vcmp.eq.s32.totalorder %v249, %v182
        %vm264 = vcmp.eq.s32.totalorder %v252, %v182
        %vm265 = vcmp.eq.s32.totalorder %v255, %v182
        %vm266 = vcmp.eq.s32.totalorder %v258, %v182
        %v267 = vsel %vm259, 1, 0
        %v268 = vsel %vm260, 1, 0
        %v269 = vsel %vm261, 1, 0
        %v270 = vsel %vm262, 1, 0
        %v271 = vsel %vm263, 1, 0
        %v272 = vsel %vm264, 1, 0
        %v273 = vsel %vm265, 1, 0
        %v274 = vsel %vm266, 1, 0
        %v275 = vcvt.s32.f32 %v267
        %v276 = vcvt.s32.f32 %v268
        %v277 = vcvt.s32.f32 %v269
        %v278 = vcvt.s32.f32 %v270
        %v279 = vcvt.s32.f32 %v271
        %v280 = vcvt.s32.f32 %v272
        %v281 = vcvt.s32.f32 %v273
        %v282 = vcvt.s32.f32 %v274
        %v283 = vpack.c.bf16 %v276, %v275
        %v284 = vpack.c.bf16 %v278, %v277
        %v285 = vpack.c.bf16 %v280, %v279
        %v286 = vpack.c.bf16 %v282, %v281
        %v287 = vadd.bf16 %v231, %v283
        %v288 = vadd.bf16 %v232, %v284
        %v289 = vadd.bf16 %v233, %v285
        %v290 = vadd.bf16 %v234, %v286
        %291 = vset.pattern.permute.xlu0 2
        %292 = vperm.xlu0 %291, %v173
        %v293 = vpop.permute.xlu0 %292
        %294 = vset.pattern.permute.xlu0 2
        %295 = vperm.xlu0 %294, %v174
        %v296 = vpop.permute.xlu0 %295
        %297 = vset.pattern.permute.xlu0 2
        %298 = vperm.xlu0 %297, %v175
        %v299 = vpop.permute.xlu0 %298
        %300 = vset.pattern.permute.xlu0 2
        %301 = vperm.xlu0 %300, %v176
        %v302 = vpop.permute.xlu0 %301
        %303 = vset.pattern.permute.xlu0 2
        %304 = vperm.xlu0 %303, %v177
        %v305 = vpop.permute.xlu0 %304
        %306 = vset.pattern.permute.xlu0 2
        %307 = vperm.xlu0 %306, %v178
        %v308 = vpop.permute.xlu0 %307
        %309 = vset.pattern.permute.xlu0 2
        %310 = vperm.xlu0 %309, %v179
        %v311 = vpop.permute.xlu0 %310
        %312 = vset.pattern.permute.xlu0 2
        %313 = vperm.xlu0 %312, %v180
        %v314 = vpop.permute.xlu0 %313
        %vm315 = vcmp.eq.s32.totalorder %v293, %v182
        %vm316 = vcmp.eq.s32.totalorder %v296, %v182
        %vm317 = vcmp.eq.s32.totalorder %v299, %v182
        %vm318 = vcmp.eq.s32.totalorder %v302, %v182
        %vm319 = vcmp.eq.s32.totalorder %v305, %v182
        %vm320 = vcmp.eq.s32.totalorder %v308, %v182
        %vm321 = vcmp.eq.s32.totalorder %v311, %v182
        %vm322 = vcmp.eq.s32.totalorder %v314, %v182
        %v323 = vsel %vm315, 1, 0
        %v324 = vsel %vm316, 1, 0
        %v325 = vsel %vm317, 1, 0
        %v326 = vsel %vm318, 1, 0
        %v327 = vsel %vm319, 1, 0
        %v328 = vsel %vm320, 1, 0
        %v329 = vsel %vm321, 1, 0
        %v330 = vsel %vm322, 1, 0
        %v331 = vcvt.s32.f32 %v323
        %v332 = vcvt.s32.f32 %v324
        %v333 = vcvt.s32.f32 %v325
        %v334 = vcvt.s32.f32 %v326
        %v335 = vcvt.s32.f32 %v327
        %v336 = vcvt.s32.f32 %v328
        %v337 = vcvt.s32.f32 %v329
        %v338 = vcvt.s32.f32 %v330
        %v339 = vpack.c.bf16 %v332, %v331
        %v340 = vpack.c.bf16 %v334, %v333
        %v341 = vpack.c.bf16 %v336, %v335
        %v342 = vpack.c.bf16 %v338, %v337
        %v343 = vadd.bf16 %v287, %v339
        %v344 = vadd.bf16 %v288, %v340
        %v345 = vadd.bf16 %v289, %v341
        %v346 = vadd.bf16 %v290, %v342
        %347 = vset.pattern.permute.xlu0 3
        %348 = vperm.xlu0 %347, %v173
        %v349 = vpop.permute.xlu0 %348
        %350 = vset.pattern.permute.xlu0 3
        %351 = vperm.xlu0 %350, %v174
        %v352 = vpop.permute.xlu0 %351
        %353 = vset.pattern.permute.xlu0 3
        %354 = vperm.xlu0 %353, %v175
        %v355 = vpop.permute.xlu0 %354
        %356 = vset.pattern.permute.xlu0 3
        %357 = vperm.xlu0 %356, %v176
        %v358 = vpop.permute.xlu0 %357
        %359 = vset.pattern.permute.xlu0 3
        %360 = vperm.xlu0 %359, %v177
        %v361 = vpop.permute.xlu0 %360
        %362 = vset.pattern.permute.xlu0 3
        %363 = vperm.xlu0 %362, %v178
        %v364 = vpop.permute.xlu0 %363
        %365 = vset.pattern.permute.xlu0 3
        %366 = vperm.xlu0 %365, %v179
        %v367 = vpop.permute.xlu0 %366
        %368 = vset.pattern.permute.xlu0 3
        %369 = vperm.xlu0 %368, %v180
        %v370 = vpop.permute.xlu0 %369
        %vm371 = vcmp.eq.s32.totalorder %v349, %v182
        %vm372 = vcmp.eq.s32.totalorder %v352, %v182
        %vm373 = vcmp.eq.s32.totalorder %v355, %v182
        %vm374 = vcmp.eq.s32.totalorder %v358, %v182
        %vm375 = vcmp.eq.s32.totalorder %v361, %v182
        %vm376 = vcmp.eq.s32.totalorder %v364, %v182
        %vm377 = vcmp.eq.s32.totalorder %v367, %v182
        %vm378 = vcmp.eq.s32.totalorder %v370, %v182
        %v379 = vsel %vm371, 1, 0
        %v380 = vsel %vm372, 1, 0
        %v381 = vsel %vm373, 1, 0
        %v382 = vsel %vm374, 1, 0
        %v383 = vsel %vm375, 1, 0
        %v384 = vsel %vm376, 1, 0
        %v385 = vsel %vm377, 1, 0
        %v386 = vsel %vm378, 1, 0
        %v387 = vcvt.s32.f32 %v379
        %v388 = vcvt.s32.f32 %v380
        %v389 = vcvt.s32.f32 %v381
        %v390 = vcvt.s32.f32 %v382
        %v391 = vcvt.s32.f32 %v383
        %v392 = vcvt.s32.f32 %v384
        %v393 = vcvt.s32.f32 %v385
        %v394 = vcvt.s32.f32 %v386
        %v395 = vpack.c.bf16 %v388, %v387
        %v396 = vpack.c.bf16 %v390, %v389
        %v397 = vpack.c.bf16 %v392, %v391
        %v398 = vpack.c.bf16 %v394, %v393
        %v399 = vadd.bf16 %v343, %v395
        %v400 = vadd.bf16 %v344, %v396
        %v401 = vadd.bf16 %v345, %v397
        %v402 = vadd.bf16 %v346, %v398
        %403 = vset.pattern.permute.xlu0 4
        %404 = vperm.xlu0 %403, %v173
        %v405 = vpop.permute.xlu0 %404
        %406 = vset.pattern.permute.xlu0 4
        %407 = vperm.xlu0 %406, %v174
        %v408 = vpop.permute.xlu0 %407
        %409 = vset.pattern.permute.xlu0 4
        %410 = vperm.xlu0 %409, %v175
        %v411 = vpop.permute.xlu0 %410
        %412 = vset.pattern.permute.xlu0 4
        %413 = vperm.xlu0 %412, %v176
        %v414 = vpop.permute.xlu0 %413
        %415 = vset.pattern.permute.xlu0 4
        %416 = vperm.xlu0 %415, %v177
        %v417 = vpop.permute.xlu0 %416
        %418 = vset.pattern.permute.xlu0 4
        %419 = vperm.xlu0 %418, %v178
        %v420 = vpop.permute.xlu0 %419
        %421 = vset.pattern.permute.xlu0 4
        %422 = vperm.xlu0 %421, %v179
        %v423 = vpop.permute.xlu0 %422
        %424 = vset.pattern.permute.xlu0 4
        %425 = vperm.xlu0 %424, %v180
        %v426 = vpop.permute.xlu0 %425
        %vm427 = vcmp.eq.s32.totalorder %v405, %v182
        %vm428 = vcmp.eq.s32.totalorder %v408, %v182
        %vm429 = vcmp.eq.s32.totalorder %v411, %v182
        %vm430 = vcmp.eq.s32.totalorder %v414, %v182
        %vm431 = vcmp.eq.s32.totalorder %v417, %v182
        %vm432 = vcmp.eq.s32.totalorder %v420, %v182
        %vm433 = vcmp.eq.s32.totalorder %v423, %v182
        %vm434 = vcmp.eq.s32.totalorder %v426, %v182
        %v435 = vsel %vm427, 1, 0
        %v436 = vsel %vm428, 1, 0
        %v437 = vsel %vm429, 1, 0
        %v438 = vsel %vm430, 1, 0
        %v439 = vsel %vm431, 1, 0
        %v440 = vsel %vm432, 1, 0
        %v441 = vsel %vm433, 1, 0
        %v442 = vsel %vm434, 1, 0
        %v443 = vcvt.s32.f32 %v435
        %v444 = vcvt.s32.f32 %v436
        %v445 = vcvt.s32.f32 %v437
        %v446 = vcvt.s32.f32 %v438
        %v447 = vcvt.s32.f32 %v439
        %v448 = vcvt.s32.f32 %v440
        %v449 = vcvt.s32.f32 %v441
        %v450 = vcvt.s32.f32 %v442
        %v451 = vpack.c.bf16 %v444, %v443
        %v452 = vpack.c.bf16 %v446, %v445
        %v453 = vpack.c.bf16 %v448, %v447
        %v454 = vpack.c.bf16 %v450, %v449
        %v455 = vadd.bf16 %v399, %v451
        %v456 = vadd.bf16 %v400, %v452
        %v457 = vadd.bf16 %v401, %v453
        %v458 = vadd.bf16 %v402, %v454
        %459 = vset.pattern.permute.xlu0 5
        %460 = vperm.xlu0 %459, %v173
        %v461 = vpop.permute.xlu0 %460
        %462 = vset.pattern.permute.xlu0 5
        %463 = vperm.xlu0 %462, %v174
        %v464 = vpop.permute.xlu0 %463
        %465 = vset.pattern.permute.xlu0 5
        %466 = vperm.xlu0 %465, %v175
        %v467 = vpop.permute.xlu0 %466
        %468 = vset.pattern.permute.xlu0 5
        %469 = vperm.xlu0 %468, %v176
        %v470 = vpop.permute.xlu0 %469
        %471 = vset.pattern.permute.xlu0 5
        %472 = vperm.xlu0 %471, %v177
        %v473 = vpop.permute.xlu0 %472
        %474 = vset.pattern.permute.xlu0 5
        %475 = vperm.xlu0 %474, %v178
        %v476 = vpop.permute.xlu0 %475
        %477 = vset.pattern.permute.xlu0 5
        %478 = vperm.xlu0 %477, %v179
        %v479 = vpop.permute.xlu0 %478
        %480 = vset.pattern.permute.xlu0 5
        %481 = vperm.xlu0 %480, %v180
        %v482 = vpop.permute.xlu0 %481
        %vm483 = vcmp.eq.s32.totalorder %v461, %v182
        %vm484 = vcmp.eq.s32.totalorder %v464, %v182
        %vm485 = vcmp.eq.s32.totalorder %v467, %v182
        %vm486 = vcmp.eq.s32.totalorder %v470, %v182
        %vm487 = vcmp.eq.s32.totalorder %v473, %v182
        %vm488 = vcmp.eq.s32.totalorder %v476, %v182
        %vm489 = vcmp.eq.s32.totalorder %v479, %v182
        %vm490 = vcmp.eq.s32.totalorder %v482, %v182
        %v491 = vsel %vm483, 1, 0
        %v492 = vsel %vm484, 1, 0
        %v493 = vsel %vm485, 1, 0
        %v494 = vsel %vm486, 1, 0
        %v495 = vsel %vm487, 1, 0
        %v496 = vsel %vm488, 1, 0
        %v497 = vsel %vm489, 1, 0
        %v498 = vsel %vm490, 1, 0
        %v499 = vcvt.s32.f32 %v491
        %v500 = vcvt.s32.f32 %v492
        %v501 = vcvt.s32.f32 %v493
        %v502 = vcvt.s32.f32 %v494
        %v503 = vcvt.s32.f32 %v495
        %v504 = vcvt.s32.f32 %v496
        %v505 = vcvt.s32.f32 %v497
        %v506 = vcvt.s32.f32 %v498
        %v507 = vpack.c.bf16 %v500, %v499
        %v508 = vpack.c.bf16 %v502, %v501
        %v509 = vpack.c.bf16 %v504, %v503
        %v510 = vpack.c.bf16 %v506, %v505
        %v511 = vadd.bf16 %v455, %v507
        %v512 = vadd.bf16 %v456, %v508
        %v513 = vadd.bf16 %v457, %v509
        %v514 = vadd.bf16 %v458, %v510
        %515 = vset.pattern.permute.xlu0 6
        %516 = vperm.xlu0 %515, %v173
        %v517 = vpop.permute.xlu0 %516
        %518 = vset.pattern.permute.xlu0 6
        %519 = vperm.xlu0 %518, %v174
        %v520 = vpop.permute.xlu0 %519
        %521 = vset.pattern.permute.xlu0 6
        %522 = vperm.xlu0 %521, %v175
        %v523 = vpop.permute.xlu0 %522
        %524 = vset.pattern.permute.xlu0 6
        %525 = vperm.xlu0 %524, %v176
        %v526 = vpop.permute.xlu0 %525
        %527 = vset.pattern.permute.xlu0 6
        %528 = vperm.xlu0 %527, %v177
        %v529 = vpop.permute.xlu0 %528
        %530 = vset.pattern.permute.xlu0 6
        %531 = vperm.xlu0 %530, %v178
        %v532 = vpop.permute.xlu0 %531
        %533 = vset.pattern.permute.xlu0 6
        %534 = vperm.xlu0 %533, %v179
        %v535 = vpop.permute.xlu0 %534
        %536 = vset.pattern.permute.xlu0 6
        %537 = vperm.xlu0 %536, %v180
        %v538 = vpop.permute.xlu0 %537
        %vm539 = vcmp.eq.s32.totalorder %v517, %v182
        %vm540 = vcmp.eq.s32.totalorder %v520, %v182
        %vm541 = vcmp.eq.s32.totalorder %v523, %v182
        %vm542 = vcmp.eq.s32.totalorder %v526, %v182
        %vm543 = vcmp.eq.s32.totalorder %v529, %v182
        %vm544 = vcmp.eq.s32.totalorder %v532, %v182
        %vm545 = vcmp.eq.s32.totalorder %v535, %v182
        %vm546 = vcmp.eq.s32.totalorder %v538, %v182
        %v547 = vsel %vm539, 1, 0
        %v548 = vsel %vm540, 1, 0
        %v549 = vsel %vm541, 1, 0
        %v550 = vsel %vm542, 1, 0
        %v551 = vsel %vm543, 1, 0
        %v552 = vsel %vm544, 1, 0
        %v553 = vsel %vm545, 1, 0
        %v554 = vsel %vm546, 1, 0
        %v555 = vcvt.s32.f32 %v547
        %v556 = vcvt.s32.f32 %v548
        %v557 = vcvt.s32.f32 %v549
        %v558 = vcvt.s32.f32 %v550
        %v559 = vcvt.s32.f32 %v551
        %v560 = vcvt.s32.f32 %v552
        %v561 = vcvt.s32.f32 %v553
        %v562 = vcvt.s32.f32 %v554
        %v563 = vpack.c.bf16 %v556, %v555
        %v564 = vpack.c.bf16 %v558, %v557
        %v565 = vpack.c.bf16 %v560, %v559
        %v566 = vpack.c.bf16 %v562, %v561
        %v567 = vadd.bf16 %v511, %v563
        %v568 = vadd.bf16 %v512, %v564
        %v569 = vadd.bf16 %v513, %v565
        %v570 = vadd.bf16 %v514, %v566
        %571 = vset.pattern.permute.xlu0 7
        %572 = vperm.xlu0 %571, %v173
        %v573 = vpop.permute.xlu0 %572
        %574 = vset.pattern.permute.xlu0 7
        %575 = vperm.xlu0 %574, %v174
        %v576 = vpop.permute.xlu0 %575
        %577 = vset.pattern.permute.xlu0 7
        %578 = vperm.xlu0 %577, %v175
        %v579 = vpop.permute.xlu0 %578
        %580 = vset.pattern.permute.xlu0 7
        %581 = vperm.xlu0 %580, %v176
        %v582 = vpop.permute.xlu0 %581
        %583 = vset.pattern.permute.xlu0 7
        %584 = vperm.xlu0 %583, %v177
        %v585 = vpop.permute.xlu0 %584
        %586 = vset.pattern.permute.xlu0 7
        %587 = vperm.xlu0 %586, %v178
        %v588 = vpop.permute.xlu0 %587
        %589 = vset.pattern.permute.xlu0 7
        %590 = vperm.xlu0 %589, %v179
        %v591 = vpop.permute.xlu0 %590
        %592 = vset.pattern.permute.xlu0 7
        %593 = vperm.xlu0 %592, %v180
        %v594 = vpop.permute.xlu0 %593
        %vm595 = vcmp.eq.s32.totalorder %v573, %v182
        %vm596 = vcmp.eq.s32.totalorder %v576, %v182
        %vm597 = vcmp.eq.s32.totalorder %v579, %v182
        %vm598 = vcmp.eq.s32.totalorder %v582, %v182
        %vm599 = vcmp.eq.s32.totalorder %v585, %v182
        %vm600 = vcmp.eq.s32.totalorder %v588, %v182
        %vm601 = vcmp.eq.s32.totalorder %v591, %v182
        %vm602 = vcmp.eq.s32.totalorder %v594, %v182
        %v603 = vsel %vm595, 1, 0
        %v604 = vsel %vm596, 1, 0
        %v605 = vsel %vm597, 1, 0
        %v606 = vsel %vm598, 1, 0
        %v607 = vsel %vm599, 1, 0
        %v608 = vsel %vm600, 1, 0
        %v609 = vsel %vm601, 1, 0
        %v610 = vsel %vm602, 1, 0
        %v611 = vcvt.s32.f32 %v603
        %v612 = vcvt.s32.f32 %v604
        %v613 = vcvt.s32.f32 %v605
        %v614 = vcvt.s32.f32 %v606
        %v615 = vcvt.s32.f32 %v607
        %v616 = vcvt.s32.f32 %v608
        %v617 = vcvt.s32.f32 %v609
        %v618 = vcvt.s32.f32 %v610
        %v619 = vpack.c.bf16 %v612, %v611
        %v620 = vpack.c.bf16 %v614, %v613
        %v621 = vpack.c.bf16 %v616, %v615
        %v622 = vpack.c.bf16 %v618, %v617
        %v623 = vadd.bf16 %v567, %v619
        %v624 = vadd.bf16 %v568, %v620
        %v625 = vadd.bf16 %v569, %v621
        %v626 = vadd.bf16 %v570, %v622
        %627 = vset.pattern.permute.xlu0 8
        %628 = vperm.xlu0 %627, %v173
        %v629 = vpop.permute.xlu0 %628
        %630 = vset.pattern.permute.xlu0 8
        %631 = vperm.xlu0 %630, %v174
        %v632 = vpop.permute.xlu0 %631
        %633 = vset.pattern.permute.xlu0 8
        %634 = vperm.xlu0 %633, %v175
        %v635 = vpop.permute.xlu0 %634
        %636 = vset.pattern.permute.xlu0 8
        %637 = vperm.xlu0 %636, %v176
        %v638 = vpop.permute.xlu0 %637
        %639 = vset.pattern.permute.xlu0 8
        %640 = vperm.xlu0 %639, %v177
        %v641 = vpop.permute.xlu0 %640
        %642 = vset.pattern.permute.xlu0 8
        %643 = vperm.xlu0 %642, %v178
        %v644 = vpop.permute.xlu0 %643
        %645 = vset.pattern.permute.xlu0 8
        %646 = vperm.xlu0 %645, %v179
        %v647 = vpop.permute.xlu0 %646
        %648 = vset.pattern.permute.xlu0 8
        %649 = vperm.xlu0 %648, %v180
        %v650 = vpop.permute.xlu0 %649
        %vm651 = vcmp.eq.s32.totalorder %v629, %v182
        %vm652 = vcmp.eq.s32.totalorder %v632, %v182
        %vm653 = vcmp.eq.s32.totalorder %v635, %v182
        %vm654 = vcmp.eq.s32.totalorder %v638, %v182
        %vm655 = vcmp.eq.s32.totalorder %v641, %v182
        %vm656 = vcmp.eq.s32.totalorder %v644, %v182
        %vm657 = vcmp.eq.s32.totalorder %v647, %v182
        %vm658 = vcmp.eq.s32.totalorder %v650, %v182
        %v659 = vsel %vm651, 1, 0
        %v660 = vsel %vm652, 1, 0
        %v661 = vsel %vm653, 1, 0
        %v662 = vsel %vm654, 1, 0
        %v663 = vsel %vm655, 1, 0
        %v664 = vsel %vm656, 1, 0
        %v665 = vsel %vm657, 1, 0
        %v666 = vsel %vm658, 1, 0
        %v667 = vcvt.s32.f32 %v659
        %v668 = vcvt.s32.f32 %v660
        %v669 = vcvt.s32.f32 %v661
        %v670 = vcvt.s32.f32 %v662
        %v671 = vcvt.s32.f32 %v663
        %v672 = vcvt.s32.f32 %v664
        %v673 = vcvt.s32.f32 %v665
        %v674 = vcvt.s32.f32 %v666
        %v675 = vpack.c.bf16 %v668, %v667
        %v676 = vpack.c.bf16 %v670, %v669
        %v677 = vpack.c.bf16 %v672, %v671
        %v678 = vpack.c.bf16 %v674, %v673
        %v679 = vadd.bf16 %v623, %v675
        %v680 = vadd.bf16 %v624, %v676
        %v681 = vadd.bf16 %v625, %v677
        %v682 = vadd.bf16 %v626, %v678
        %683 = vset.pattern.permute.xlu0 9
        %684 = vperm.xlu0 %683, %v173
        %v685 = vpop.permute.xlu0 %684
        %686 = vset.pattern.permute.xlu0 9
        %687 = vperm.xlu0 %686, %v174
        %v688 = vpop.permute.xlu0 %687
        %689 = vset.pattern.permute.xlu0 9
        %690 = vperm.xlu0 %689, %v175
        %v691 = vpop.permute.xlu0 %690
        %692 = vset.pattern.permute.xlu0 9
        %693 = vperm.xlu0 %692, %v176
        %v694 = vpop.permute.xlu0 %693
        %695 = vset.pattern.permute.xlu0 9
        %696 = vperm.xlu0 %695, %v177
        %v697 = vpop.permute.xlu0 %696
        %698 = vset.pattern.permute.xlu0 9
        %699 = vperm.xlu0 %698, %v178
        %v700 = vpop.permute.xlu0 %699
        %701 = vset.pattern.permute.xlu0 9
        %702 = vperm.xlu0 %701, %v179
        %v703 = vpop.permute.xlu0 %702
        %704 = vset.pattern.permute.xlu0 9
        %705 = vperm.xlu0 %704, %v180
        %v706 = vpop.permute.xlu0 %705
        %vm707 = vcmp.eq.s32.totalorder %v685, %v182
        %vm708 = vcmp.eq.s32.totalorder %v688, %v182
        %vm709 = vcmp.eq.s32.totalorder %v691, %v182
        %vm710 = vcmp.eq.s32.totalorder %v694, %v182
        %vm711 = vcmp.eq.s32.totalorder %v697, %v182
        %vm712 = vcmp.eq.s32.totalorder %v700, %v182
        %vm713 = vcmp.eq.s32.totalorder %v703, %v182
        %vm714 = vcmp.eq.s32.totalorder %v706, %v182
        %v715 = vsel %vm707, 1, 0
        %v716 = vsel %vm708, 1, 0
        %v717 = vsel %vm709, 1, 0
        %v718 = vsel %vm710, 1, 0
        %v719 = vsel %vm711, 1, 0
        %v720 = vsel %vm712, 1, 0
        %v721 = vsel %vm713, 1, 0
        %v722 = vsel %vm714, 1, 0
        %v723 = vcvt.s32.f32 %v715
        %v724 = vcvt.s32.f32 %v716
        %v725 = vcvt.s32.f32 %v717
        %v726 = vcvt.s32.f32 %v718
        %v727 = vcvt.s32.f32 %v719
        %v728 = vcvt.s32.f32 %v720
        %v729 = vcvt.s32.f32 %v721
        %v730 = vcvt.s32.f32 %v722
        %v731 = vpack.c.bf16 %v724, %v723
        %v732 = vpack.c.bf16 %v726, %v725
        %v733 = vpack.c.bf16 %v728, %v727
        %v734 = vpack.c.bf16 %v730, %v729
        %v735 = vadd.bf16 %v679, %v731
        %v736 = vadd.bf16 %v680, %v732
        %v737 = vadd.bf16 %v681, %v733
        %v738 = vadd.bf16 %v682, %v734
        %739 = vset.pattern.permute.xlu0 10
        %740 = vperm.xlu0 %739, %v173
        %v741 = vpop.permute.xlu0 %740
        %742 = vset.pattern.permute.xlu0 10
        %743 = vperm.xlu0 %742, %v174
        %v744 = vpop.permute.xlu0 %743
        %745 = vset.pattern.permute.xlu0 10
        %746 = vperm.xlu0 %745, %v175
        %v747 = vpop.permute.xlu0 %746
        %748 = vset.pattern.permute.xlu0 10
        %749 = vperm.xlu0 %748, %v176
        %v750 = vpop.permute.xlu0 %749
        %751 = vset.pattern.permute.xlu0 10
        %752 = vperm.xlu0 %751, %v177
        %v753 = vpop.permute.xlu0 %752
        %754 = vset.pattern.permute.xlu0 10
        %755 = vperm.xlu0 %754, %v178
        %v756 = vpop.permute.xlu0 %755
        %757 = vset.pattern.permute.xlu0 10
        %758 = vperm.xlu0 %757, %v179
        %v759 = vpop.permute.xlu0 %758
        %760 = vset.pattern.permute.xlu0 10
        %761 = vperm.xlu0 %760, %v180
        %v762 = vpop.permute.xlu0 %761
        %vm763 = vcmp.eq.s32.totalorder %v741, %v182
        %vm764 = vcmp.eq.s32.totalorder %v744, %v182
        %vm765 = vcmp.eq.s32.totalorder %v747, %v182
        %vm766 = vcmp.eq.s32.totalorder %v750, %v182
        %vm767 = vcmp.eq.s32.totalorder %v753, %v182
        %vm768 = vcmp.eq.s32.totalorder %v756, %v182
        %vm769 = vcmp.eq.s32.totalorder %v759, %v182
        %vm770 = vcmp.eq.s32.totalorder %v762, %v182
        %v771 = vsel %vm763, 1, 0
        %v772 = vsel %vm764, 1, 0
        %v773 = vsel %vm765, 1, 0
        %v774 = vsel %vm766, 1, 0
        %v775 = vsel %vm767, 1, 0
        %v776 = vsel %vm768, 1, 0
        %v777 = vsel %vm769, 1, 0
        %v778 = vsel %vm770, 1, 0
        %v779 = vcvt.s32.f32 %v771
        %v780 = vcvt.s32.f32 %v772
        %v781 = vcvt.s32.f32 %v773
        %v782 = vcvt.s32.f32 %v774
        %v783 = vcvt.s32.f32 %v775
        %v784 = vcvt.s32.f32 %v776
        %v785 = vcvt.s32.f32 %v777
        %v786 = vcvt.s32.f32 %v778
        %v787 = vpack.c.bf16 %v780, %v779
        %v788 = vpack.c.bf16 %v782, %v781
        %v789 = vpack.c.bf16 %v784, %v783
        %v790 = vpack.c.bf16 %v786, %v785
        %v791 = vadd.bf16 %v735, %v787
        %v792 = vadd.bf16 %v736, %v788
        %v793 = vadd.bf16 %v737, %v789
        %v794 = vadd.bf16 %v738, %v790
        %v795 = vld [vmem:[%s1] sm:$0xf]
        %v796 = vld [vmem:[%s1 + $0x4] sm:$0xf]
        %v797 = vld [vmem:[%s1 + $0x8] sm:$0xf]
        %v798 = vld [vmem:[%s1 + $0xc] sm:$0xf]
        %v799 = vld [vmem:[%s1 + $0x10] sm:$0xf]
        %v800 = vld [vmem:[%s1 + $0x14] sm:$0xf]
        %v801 = vld [vmem:[%s1 + $0x18] sm:$0xf]
        %v802 = vld [vmem:[%s1 + $0x1c] sm:$0xf]
        %v803 = vld [vmem:[%s1 + $0x20] sm:$0xf]
        %v804 = vld [vmem:[%s1 + $0x24] sm:$0xf]
        %v805 = vld [vmem:[%s1 + $0x28] sm:$0xf]
        %v806 = vld [vmem:[%s1 + $0x2c] sm:$0xf]
        %v807 = vld [vmem:[%s1 + $0x30] sm:$0xf]
        %v808 = vld [vmem:[%s1 + $0x34] sm:$0xf]
        %v809 = vld [vmem:[%s1 + $0x38] sm:$0xf]
        %v810 = vld [vmem:[%s1 + $0x3c] sm:$0xf]
        %v811 = vld [vmem:[%s2] sm:$0x1]
        %v813 = vlaneseq
        %v814 = vshrl.u32 %v813, 7
        %v815 = vsub.s32 0, %v814
        %v816 = vrot.slane %v811, %v815
        %v834 = vunpack.c.l.b16 %v795
        %v835 = vunpack.c.l.b16 %v796
        %v836 = vunpack.c.l.b16 %v797
        %v837 = vunpack.c.l.b16 %v798
        %v838 = vunpack.c.l.b16 %v799
        %v839 = vunpack.c.l.b16 %v800
        %v840 = vunpack.c.l.b16 %v801
        %v841 = vunpack.c.l.b16 %v802
        %v842 = vunpack.c.l.b16 %v803
        %v843 = vunpack.c.l.b16 %v804
        %v844 = vunpack.c.l.b16 %v805
        %v845 = vunpack.c.l.b16 %v806
        %v846 = vunpack.c.l.b16 %v807
        %v847 = vunpack.c.l.b16 %v808
        %v848 = vunpack.c.l.b16 %v809
        %v849 = vunpack.c.l.b16 %v810
        %v850 = vpack.c.b16 %v835, %v834
        %v851 = vpack.c.b16 %v837, %v836
        %v852 = vpack.c.b16 %v839, %v838
        %v853 = vpack.c.b16 %v841, %v840
        %v854 = vpack.c.b16 %v843, %v842
        %v855 = vpack.c.b16 %v845, %v844
        %v856 = vpack.c.b16 %v847, %v846
        %v857 = vpack.c.b16 %v849, %v848
        %866 = vmatprep.subr.bf16.mxu0 0
        %867 = vmatpush1.bf16.msra.mxu0 %v850
        %868 = vmatprep.subr.bf16.mxu0 0
        %869 = vmatpush1.bf16.msra.mxu0 %v851
        %870 = vmatprep.subr.bf16.mxu0 0
        %871 = vmatpush1.bf16.msra.mxu0 %v852
        %872 = vmatprep.subr.bf16.mxu0 0
        %873 = vmatpush1.bf16.msra.mxu0 %v853
        %874 = vmatprep.subr.bf16.mxu0 0
        %875 = vmatpush1.bf16.msra.mxu0 %v854
        %876 = vmatprep.subr.bf16.mxu0 0
        %877 = vmatpush1.bf16.msra.mxu0 %v855
        %878 = vmatprep.subr.bf16.mxu0 0
        %879 = vmatpush1.bf16.msra.mxu0 %v856
        %880 = vmatprep.subr.bf16.mxu0 0
        %881 = vmatpush1.bf16.msra.mxu0 %v857
        %882 = vmatprep.subr.bf16.mxu0 0
        %883 = vmatpush1.bf16.msra.mxu0 0
        %884 = vmatprep.subr.bf16.mxu0 0
        %885 = vmatpush1.bf16.msra.mxu0 0
        %886 = vmatprep.subr.bf16.mxu0 0
        %887 = vmatpush1.bf16.msra.mxu0 0
        %888 = vmatprep.subr.bf16.mxu0 0
        %889 = vmatpush1.bf16.msra.mxu0 0
        %890 = vmatprep.subr.bf16.mxu0 0
        %891 = vmatpush1.bf16.msra.mxu0 0
        %892 = vmatprep.subr.bf16.mxu0 0
        %893 = vmatpush1.bf16.msra.mxu0 0
        %894 = vmatprep.subr.bf16.mxu0 0
        %895 = vmatpush1.bf16.msra.mxu0 0
        %896 = vmatprep.subr.bf16.mxu0 0
        %897 = vmatpush1.bf16.msra.mxu0 0
        %898 = vmatprep.mubr.bf16.mxu0 0
        %899 = vmatmul.mubr.bf16.gmra.mrb[0].mxu0 %v791
        %v900 = vpop.f32.mrb[0].mxu0
        %v901 = vadd.f32 %v816, %v900
        %v902 = vpop.f32.mrb[0].mxu0
        %v903 = vpop.f32.mrb[0].mxu0
        %v904 = vadd.f32 %v816, %v903
        %v905 = vpop.f32.mrb[0].mxu0
        %906 = vmatprep.mubr.bf16.mxu0 0
        %907 = vmatmul.mubr.bf16.gmra.mrb[0].mxu0 %v792
        %v908 = vpop.f32.mrb[0].mxu0
        %v909 = vadd.f32 %v816, %v908
        %v910 = vpop.f32.mrb[0].mxu0
        %v911 = vpop.f32.mrb[0].mxu0
        %v912 = vadd.f32 %v816, %v911
        %v913 = vpop.f32.mrb[0].mxu0
        %914 = vmatprep.mubr.bf16.mxu0 0
        %915 = vmatmul.mubr.bf16.gmra.mrb[0].mxu0 %v793
        %v916 = vpop.f32.mrb[0].mxu0
        %v917 = vadd.f32 %v816, %v916
        %v918 = vpop.f32.mrb[0].mxu0
        %v919 = vpop.f32.mrb[0].mxu0
        %v920 = vadd.f32 %v816, %v919
        %v921 = vpop.f32.mrb[0].mxu0
        %922 = vmatprep.mubr.bf16.mxu0 0
        %923 = vmatmul.mubr.bf16.gmra.mrb[0].mxu0 %v794
        %v924 = vpop.f32.mrb[0].mxu0
        %v925 = vadd.f32 %v816, %v924
        %v926 = vpop.f32.mrb[0].mxu0
        %v927 = vpop.f32.mrb[0].mxu0
        %v928 = vadd.f32 %v816, %v927
        %v929 = vpop.f32.mrb[0].mxu0
        %930 = vdwg.mxu0
        %v931 = vmax.f32 %v901, 0.0
        %v932 = vmax.f32 %v904, 0.0
        %v933 = vmax.f32 %v909, 0.0
        %v934 = vmax.f32 %v912, 0.0
        %v935 = vmax.f32 %v917, 0.0
        %v936 = vmax.f32 %v920, 0.0
        %v937 = vmax.f32 %v925, 0.0
        %v938 = vmax.f32 %v928, 0.0
        %v939 = vpack.c.bf16 %v932, %v931
        %v940 = vpack.c.bf16 %v934, %v933
        %v941 = vpack.c.bf16 %v936, %v935
        %v942 = vpack.c.bf16 %v938, %v937
        %v947 = vunpack.c.l.b16 %v939
        %v948 = vunpack.c.h.b16 %v939
        %v949 = vunpack.c.l.b16 %v940
        %v950 = vunpack.c.h.b16 %v940
        %v951 = vunpack.c.l.b16 %v941
        %v952 = vunpack.c.h.b16 %v941
        %v953 = vunpack.c.l.b16 %v942
        %v954 = vunpack.c.h.b16 %v942
        %v955 = vpack.c.b16 %v947, %v947
        %v956 = vpack.c.b16 %v948, %v948
        %v957 = vpack.c.b16 %v949, %v949
        %v958 = vpack.c.b16 %v950, %v950
        %v959 = vpack.c.b16 %v951, %v951
        %v960 = vpack.c.b16 %v952, %v952
        %v961 = vpack.c.b16 %v953, %v953
        %v962 = vpack.c.b16 %v954, %v954
        %971 = vst [vmem:[%s164] sm:$0xf] %v955
        %972 = vst [vmem:[%s164 + $0x4] sm:$0xf] %v956
        %973 = vst [vmem:[%s164 + $0x8] sm:$0xf] %v957
        %974 = vst [vmem:[%s164 + $0xc] sm:$0xf] %v958
        %975 = vst [vmem:[%s164 + $0x10] sm:$0xf] %v959
        %976 = vst [vmem:[%s164 + $0x14] sm:$0xf] %v960
        %977 = vst [vmem:[%s164 + $0x18] sm:$0xf] %v961
        %978 = vst [vmem:[%s164 + $0x1c] sm:$0xf] %v962
        %s979 = sand.u32 %s93, 1
        %s980 = scalar_lea.sflag [#allocation3], %s979
        %s981 = sand.u32 %s93, 1
        %s982 = smul.addr %s981, 32
        %s983 = scalar_lea.vmem [#allocation2], %s982
        // Predicated region
        $region33: #{tpu_custom_call.1} parent=31 // pred_check
          %p984 = pneg %p103
        $region34: #{tpu_custom_call.1} parent=31 // pred_check_branch
          %986 = sbr.rel (%p984) target = $region36
        $region35: #{tpu_custom_call.1} parent=31 // pred_region
          %s987 = smul.u32 8, %s17
          %s989 = ssub.s32 512, 512
          %990 = vsyncadd %s980, %s989
          %s991 = smul.addr %s987, 64
          %s992 = scalar_lea.hbm %s3, %s991
          %s993 = sshll.u32 %s983, 4
          %s994 = int_to_ptr.vmem [resolvable:$true] %s993
          %999 = dma.vmem_to_hbm [thread:$0]  %s994, 512, %s992, %s980, 64, 64, 4
        $region36: #{tpu_custom_call.1} parent=31 // pred_fallthru
          _
      $region32: #{tpu_custom_call.1} parent=5 // pred_fallthru
        _
      %p1000 = scmp.le.s32.totalorder 2, %s12
      // Predicated region
      $region37: #{tpu_custom_call.1} parent=5 // pred_check
        %p1001 = pneg %p1000
      $region38: #{tpu_custom_call.1} parent=5 // pred_check_branch
        %1003 = sbr.rel (%p1001) target = $region40
      $region39: #{tpu_custom_call.1} parent=5 // pred_region
        %s1004 = ssub.s32 %s12, 2
        // Predicated region
        $region41: #{tpu_custom_call.1} parent=39 // pred_check
          %p1005 = pneg %p109
        $region42: #{tpu_custom_call.1} parent=39 // pred_check_branch
          %1007 = sbr.rel (%p1005) target = $region44
        $region43: #{tpu_custom_call.1} parent=39 // pred_region
          %s1008 = sand.u32 %s94, 1
          %s1009 = scalar_lea.sflag [#allocation3], %s1008
          %s1010 = sand.u32 %s94, 1
          %s1011 = smul.addr %s1010, 32
          %s1012 = scalar_lea.vmem [#allocation2], %s1011
          %1013 = dma.done %s1009, 512
        $region44: #{tpu_custom_call.1} parent=39 // pred_fallthru
          _
      $region40: #{tpu_custom_call.1} parent=5 // pred_fallthru
        _
    $region6: #{tpu_custom_call.1} parent=1 // loop_footer
      %s16 = sadd.s32 1, %s12
    $region7: #{tpu_custom_call.1} parent=1 // loop_footer_branch
      %11 = sbr.rel target = $region3
    $region8: #{tpu_custom_call.1} parent=1 // loop_exit
      _
    %1014 = vsyncpa [#allocation3], 1
    %s1015 = scalar_lea.sflag [#allocation3], 1
    %1016 = vsyncpa %s1015, 1

// kernel: tpu_custom_call.1
$region0: #{tpu_custom_call.1}
  #allocation0 [shape = 'u32[]', space=smem, size = 0x4, offset = 0x4, fixed_abs, tag = 'smem constant byte address 0x4 - core index']
  #allocation1 [shape = 'u32[144,128]{1,0:T(1,128)}', space=vmem, size = 0x12000, scoped, tag = 'internal scratch']
  %s0 = inlined_call_operand.vmem [shape: s32[256,11], index: 0, kind: input, shape index: {}]
  %s1 = inlined_call_operand.vmem [shape: bf16[128,128], index: 1, kind: input, shape index: {}]
  %s2 = inlined_call_operand.vmem [shape: f32[1,128], index: 2, kind: input, shape index: {}]
  %s3 = inlined_call_operand.hbm [shape: bf16[256,128], index: 3, kind: output, shape index: {}]
  %s4 = sld [smem:[#allocation0]]
  $region45: #{tpu_custom_call.1} parent=0
    _
  %s6 = ssub.s32 1, %s4
  %s7 = scalar_select 0, %s6, %s4
  $region1: #{tpu_custom_call.1} parent=0
    #allocation2 [shape = 'u8[32768]{0}', space=vmem, size = 0x8000, scoped, tag = 'output window, operand 0']
    #allocation3 [shape = 's32[2]{0}', space=sflag, size = 0x8, scoped, tag = 'scoped memory for tpu_custom_call.1']
    %8 = vsyncpa [#allocation3], 0
    %s9 = scalar_lea.sflag [#allocation3], 1
    %10 = vsyncpa %s9, 0
    loop: start=0, step=1, limit=6
    $region2: #{tpu_custom_call.1} parent=1 // loop_pre_header
      _
    $region3: #{tpu_custom_call.1} parent=1 // loop_header
      %s12 = sphi 0, %s16
      %p13 = scmp.ge.s32.totalorder %s12, 6
      %s22 = sphi 0, %s24
      %s25 = sphi 0, %s22
      %s26 = sphi 0, %s25
      %s42 = sphi 0, %s26
      %s46 = sphi 0, %s46
      %s48 = sphi 0, %s46
      %s49 = sphi 0, %s48
      %s63 = sphi 0, %s49
      %s67 = sphi 0, %s67
      %s69 = sphi 0, %s67
      %s70 = sphi 0, %s69
      %s84 = sphi 0, %s70
      %s90 = sphi 0, %s92
      %s93 = sphi 0, %s90
      %s94 = sphi 0, %s93
      %s110 = sphi 0, %s94
    $region4: #{tpu_custom_call.1} parent=1 // loop_header_branch
      %15 = sbr.rel (%p13) target = $region8
    $region5: #{tpu_custom_call.1} parent=1 // loop_body
      %s17 = ssub.s32 %s12, 1
      %s18 = ssub.s32 %s12, 2
      %s19 = sadd.s32 %s12, 1
      %s20 = ssub.s32 %s12, %s19
      %p21 = scmp.eq.s32.totalorder %s20, 0
      %s23 = sadd.s32 %s22, 1
      %s24 = scalar_select %p21, %s22, %s23
      %p27 = pneg %p21
      %p28 = scmp.eq.s32.totalorder %s12, 3
      %p29 = por %p27, %p28
      %p30 = scmp.ne.s32.totalorder %s22, %s25
      %p31 = scmp.eq.s32.totalorder %s12, 0
      %p32 = por %p30, %p31
      %p33 = scmp.ne.s32.totalorder %s22, %s25
      %p34 = scmp.eq.s32.totalorder %s17, 3
      %p35 = por %p33, %p34
      %p36 = scmp.ne.s32.totalorder %s25, %s26
      %p37 = scmp.eq.s32.totalorder %s17, 0
      %p38 = por %p36, %p37
      %p39 = scmp.ne.s32.totalorder %s25, %s26
      %p40 = scmp.eq.s32.totalorder %s18, 3
      %p41 = por %p39, %p40
      %p43 = scmp.ne.s32.totalorder %s26, %s42
      %p44 = scmp.eq.s32.totalorder %s18, 0
      %p45 = por %p43, %p44
      %s47 = sadd.s32 %s46, 1
      %p50 = scmp.eq.s32.totalorder %s12, 3
      %p51 = scmp.ne.s32.totalorder %s46, %s48
      %p52 = scmp.eq.s32.totalorder %s12, 0
      %p53 = por %p51, %p52
      %p54 = scmp.ne.s32.totalorder %s46, %s48
      %p55 = scmp.eq.s32.totalorder %s17, 3
      %p56 = por %p54, %p55
      %p57 = scmp.ne.s32.totalorder %s48, %s49
      %p58 = scmp.eq.s32.totalorder %s17, 0
      %p59 = por %p57, %p58
      %p60 = scmp.ne.s32.totalorder %s48, %s49
      %p61 = scmp.eq.s32.totalorder %s18, 3
      %p62 = por %p60, %p61
      %p64 = scmp.ne.s32.totalorder %s49, %s63
      %p65 = scmp.eq.s32.totalorder %s18, 0
      %p66 = por %p64, %p65
      %s68 = sadd.s32 %s67, 1
      %p71 = scmp.eq.s32.totalorder %s12, 3
      %p72 = scmp.ne.s32.totalorder %s67, %s69
      %p73 = scmp.eq.s32.totalorder %s12, 0
      %p74 = por %p72, %p73
      %p75 = scmp.ne.s32.totalorder %s67, %s69
      %p76 = scmp.eq.s32.totalorder %s17, 3
      %p77 = por %p75, %p76
      %p78 = scmp.ne.s32.totalorder %s69, %s70
      %p79 = scmp.eq.s32.totalorder %s17, 0
      %p80 = por %p78, %p79
      %p81 = scmp.ne.s32.totalorder %s69, %s70
      %p82 = scmp.eq.s32.totalorder %s18, 3
      %p83 = por %p81, %p82
      %p85 = scmp.ne.s32.totalorder %s70, %s84
      %p86 = scmp.eq.s32.totalorder %s18, 0
      %p87 = por %p85, %p86
      %s88 = ssub.s32 %s12, %s19
      %p89 = scmp.eq.s32.totalorder %s88, 0
      %s91 = sadd.s32 %s90, 1
      %s92 = scalar_select %p89, %s90, %s91
      %p95 = pneg %p89
      %p96 = scmp.eq.s32.totalorder %s12, 3
      %p97 = por %p95, %p96
      %p98 = scmp.ne.s32.totalorder %s90, %s93
      %p99 = scmp.eq.s32.totalorder %s12, 0
      %p100 = por %p98, %p99
      %p101 = scmp.ne.s32.totalorder %s90, %s93
      %p102 = scmp.eq.s32.totalorder %s17, 3
      %p103 = por %p101, %p102
      %p104 = scmp.ne.s32.totalorder %s93, %s94
      %p105 = scmp.eq.s32.totalorder %s17, 0
      %p106 = por %p104, %p105
      %p107 = scmp.ne.s32.totalorder %s93, %s94
      %p108 = scmp.eq.s32.totalorder %s18, 3
      %p109 = por %p107, %p108
      %p111 = scmp.ne.s32.totalorder %s94, %s110
      %p112 = scmp.eq.s32.totalorder %s18, 0
      %p113 = por %p111, %p112
      %p114 = scmp.le.s32.totalorder 1, %s12
      %p115 = scmp.lt.s32.totalorder %s12, 5
      %p116 = pnand %p114, %p115
      %p117 = pneg %p116
      // Predicated region
      $region9: #{tpu_custom_call.1} parent=5 // pred_check
        _
      $region10: #{tpu_custom_call.1} parent=5 // pred_check_branch
        %119 = sbr.rel (%p116) target = $region12
      $region11: #{tpu_custom_call.1} parent=5 // pred_region
        %s120 = ssub.s32 %s12, 1
        // Predicated region
        $region13: #{tpu_custom_call.1} parent=11 // pred_check
          %p121 = pneg %p59
        $region14: #{tpu_custom_call.1} parent=11 // pred_check_branch
          %123 = sbr.rel (%p121) target = $region16
        $region15: #{tpu_custom_call.1} parent=11 // pred_region
          _
        $region16: #{tpu_custom_call.1} parent=11 // pred_fallthru
          _
        // Predicated region
        $region17: #{tpu_custom_call.1} parent=11 // pred_check
          %p124 = pneg %p80
        $region18: #{tpu_custom_call.1} parent=11 // pred_check_branch
          %126 = sbr.rel (%p124) target = $region20
        $region19: #{tpu_custom_call.1} parent=11 // pred_region
          _
        $region20: #{tpu_custom_call.1} parent=11 // pred_fallthru
          _
      $region12: #{tpu_custom_call.1} parent=5 // pred_fallthru
        _
      %p127 = scmp.lt.s32.totalorder %s12, 4
      // Predicated region
      $region21: #{tpu_custom_call.1} parent=5 // pred_check
        %p128 = pneg %p127
      $region22: #{tpu_custom_call.1} parent=5 // pred_check_branch
        %130 = sbr.rel (%p128) target = $region24
      $region23: #{tpu_custom_call.1} parent=5 // pred_region
        // Predicated region
        $region25: #{tpu_custom_call.1} parent=23 // pred_check
          %p131 = pneg %p32
        $region26: #{tpu_custom_call.1} parent=23 // pred_check_branch
          %133 = sbr.rel (%p131) target = $region28
        $region27: #{tpu_custom_call.1} parent=23 // pred_region
          %s134 = smul.u32 8, %s12
          %p135 = scmp.lt.s32.totalorder %s134, 31
          %s136 = scalar_select %p135, %s134, 31
          %s137 = smul.addr %s136, 8
          %s138 = scalar_lea.vmem %s0, %s137
          %s139 = smul.u32 8, %s12
        $region28: #{tpu_custom_call.1} parent=23 // pred_fallthru
          _
      $region24: #{tpu_custom_call.1} parent=5 // pred_fallthru
        _
      %p140 = scmp.le.s32.totalorder 1, %s12
      %p141 = scmp.lt.s32.totalorder %s12, 5
      %p142 = pnand %p140, %p141
      %p143 = pneg %p142
      // Predicated region
      $region29: #{tpu_custom_call.1} parent=5 // pred_check
        _
      $region30: #{tpu_custom_call.1} parent=5 // pred_check_branch
        %145 = sbr.rel (%p142) target = $region32
      $region31: #{tpu_custom_call.1} parent=5 // pred_region
        %s146 = ssub.s32 %s12, 1
        %s147 = smul.u32 8, %s17
        %p148 = scmp.lt.s32.totalorder %s147, 31
        %s149 = scalar_select %p148, %s147, 31
        %s150 = smul.addr %s149, 8
        %s151 = scalar_lea.vmem %s0, %s150
        %p152 = pneg %p38
        %p153 = pneg %p35
        %p154 = pneg %p59
        %p155 = pneg %p56
        %p156 = pneg %p80
        %p157 = pneg %p77
        %p158 = pneg %p106
        %p159 = pneg %p103
        %s160 = sand.u32 %s93, 1
        %s161 = scalar_lea.sflag [#allocation3], %s160
        %s162 = sand.u32 %s93, 1
        %s163 = smul.addr %s162, 32
        %s164 = scalar_lea.vmem [#allocation2], %s163
        %s165 = smul.u32 8, %s17
        %p166 = scmp.lt.s32.totalorder %s165, 31
        %s167 = scalar_select %p166, %s165, 31
        %s168 = smul.addr %s167, 8
        %s169 = scalar_lea.vmem %s0, %s168
        %s170 = smul.u32 8, %s17
        %s171 = smul.u32 8, %s17
        %v173 = vld [vmem:[%s169] sm:$0xff]
        %v174 = vld [vmem:[%s169 + $0x8] sm:$0xff]
        %v175 = vld [vmem:[%s169 + $0x10] sm:$0xff]
        %v176 = vld [vmem:[%s169 + $0x18] sm:$0xff]
        %v177 = vld [vmem:[%s169 + $0x20] sm:$0xff]
        %v178 = vld [vmem:[%s169 + $0x28] sm:$0xff]
        %v179 = vld [vmem:[%s169 + $0x30] sm:$0xff]
        %v180 = vld [vmem:[%s169 + $0x38] sm:$0xff]
        %v181 = vlaneseq
        %v182 = vand.u32 %v181, 127
        %183 = vset.pattern.permute.xlu0 0
        %184 = vperm.xlu0 %183, %v173
        %v185 = vpop.permute.xlu0 %184
        %186 = vset.pattern.permute.xlu0 0
        %187 = vperm.xlu0 %186, %v174
        %v188 = vpop.permute.xlu0 %187
        %189 = vset.pattern.permute.xlu0 0
        %190 = vperm.xlu0 %189, %v175
        %v191 = vpop.permute.xlu0 %190
        %192 = vset.pattern.permute.xlu0 0
        %193 = vperm.xlu0 %192, %v176
        %v194 = vpop.permute.xlu0 %193
        %195 = vset.pattern.permute.xlu0 0
        %196 = vperm.xlu0 %195, %v177
        %v197 = vpop.permute.xlu0 %196
        %198 = vset.pattern.permute.xlu0 0
        %199 = vperm.xlu0 %198, %v178
        %v200 = vpop.permute.xlu0 %199
        %201 = vset.pattern.permute.xlu0 0
        %202 = vperm.xlu0 %201, %v179
        %v203 = vpop.permute.xlu0 %202
        %204 = vset.pattern.permute.xlu0 0
        %205 = vperm.xlu0 %204, %v180
        %v206 = vpop.permute.xlu0 %205
        %vm207 = vcmp.eq.s32.totalorder %v185, %v182
        %vm208 = vcmp.eq.s32.totalorder %v188, %v182
        %vm209 = vcmp.eq.s32.totalorder %v191, %v182
        %vm210 = vcmp.eq.s32.totalorder %v194, %v182
        %vm211 = vcmp.eq.s32.totalorder %v197, %v182
        %vm212 = vcmp.eq.s32.totalorder %v200, %v182
        %vm213 = vcmp.eq.s32.totalorder %v203, %v182
        %vm214 = vcmp.eq.s32.totalorder %v206, %v182
        %v215 = vsel %vm207, 1, 0
        %v216 = vsel %vm208, 1, 0
        %v217 = vsel %vm209, 1, 0
        %v218 = vsel %vm210, 1, 0
        %v219 = vsel %vm211, 1, 0
        %v220 = vsel %vm212, 1, 0
        %v221 = vsel %vm213, 1, 0
        %v222 = vsel %vm214, 1, 0
        %v223 = vcvt.s32.f32 %v215
        %v224 = vcvt.s32.f32 %v216
        %v225 = vcvt.s32.f32 %v217
        %v226 = vcvt.s32.f32 %v218
        %v227 = vcvt.s32.f32 %v219
        %v228 = vcvt.s32.f32 %v220
        %v229 = vcvt.s32.f32 %v221
        %v230 = vcvt.s32.f32 %v222
        %v231 = vpack.c.bf16 %v224, %v223
        %v232 = vpack.c.bf16 %v226, %v225
        %v233 = vpack.c.bf16 %v228, %v227
        %v234 = vpack.c.bf16 %v230, %v229
        %235 = vset.pattern.permute.xlu0 1
        %236 = vperm.xlu0 %235, %v173
        %v237 = vpop.permute.xlu0 %236
        %238 = vset.pattern.permute.xlu0 1
        %239 = vperm.xlu0 %238, %v174
        %v240 = vpop.permute.xlu0 %239
        %241 = vset.pattern.permute.xlu0 1
        %242 = vperm.xlu0 %241, %v175
        %v243 = vpop.permute.xlu0 %242
        %244 = vset.pattern.permute.xlu0 1
        %245 = vperm.xlu0 %244, %v176
        %v246 = vpop.permute.xlu0 %245
        %247 = vset.pattern.permute.xlu0 1
        %248 = vperm.xlu0 %247, %v177
        %v249 = vpop.permute.xlu0 %248
        %250 = vset.pattern.permute.xlu0 1
        %251 = vperm.xlu0 %250, %v178
        %v252 = vpop.permute.xlu0 %251
        %253 = vset.pattern.permute.xlu0 1
        %254 = vperm.xlu0 %253, %v179
        %v255 = vpop.permute.xlu0 %254
        %256 = vset.pattern.permute.xlu0 1
        %257 = vperm.xlu0 %256, %v180
        %v258 = vpop.permute.xlu0 %257
        %vm259 = vcmp.eq.s32.totalorder %v237, %v182
        %vm260 = vcmp.eq.s32.totalorder %v240, %v182
        %vm261 = vcmp.eq.s32.totalorder %v243, %v182
        %vm262 = vcmp.eq.s32.totalorder %v246, %v182
        %vm263 = vcmp.eq.s32.totalorder %v249, %v182
        %vm264 = vcmp.eq.s32.totalorder %v252, %v182
        %vm265 = vcmp.eq.s32.totalorder %v255, %v182
        %vm266 = vcmp.eq.s32.totalorder %v258, %v182
        %v267 = vsel %vm259, 1, 0
        %v268 = vsel %vm260, 1, 0
        %v269 = vsel %vm261, 1, 0
        %v270 = vsel %vm262, 1, 0
        %v271 = vsel %vm263, 1, 0
        %v272 = vsel %vm264, 1, 0
        %v273 = vsel %vm265, 1, 0
        %v274 = vsel %vm266, 1, 0
        %v275 = vcvt.s32.f32 %v267
        %v276 = vcvt.s32.f32 %v268
        %v277 = vcvt.s32.f32 %v269
        %v278 = vcvt.s32.f32 %v270
        %v279 = vcvt.s32.f32 %v271
        %v280 = vcvt.s32.f32 %v272
        %v281 = vcvt.s32.f32 %v273
        %v282 = vcvt.s32.f32 %v274
        %v283 = vpack.c.bf16 %v276, %v275
        %v284 = vpack.c.bf16 %v278, %v277
        %v285 = vpack.c.bf16 %v280, %v279
        %v286 = vpack.c.bf16 %v282, %v281
        %v287 = vadd.bf16 %v231, %v283
        %v288 = vadd.bf16 %v232, %v284
        %v289 = vadd.bf16 %v233, %v285
        %v290 = vadd.bf16 %v234, %v286
        %291 = vset.pattern.permute.xlu0 2
        %292 = vperm.xlu0 %291, %v173
        %v293 = vpop.permute.xlu0 %292
        %294 = vset.pattern.permute.xlu0 2
        %295 = vperm.xlu0 %294, %v174
        %v296 = vpop.permute.xlu0 %295
        %297 = vset.pattern.permute.xlu0 2
        %298 = vperm.xlu0 %297, %v175
        %v299 = vpop.permute.xlu0 %298
        %300 = vset.pattern.permute.xlu0 2
        %301 = vperm.xlu0 %300, %v176
        %v302 = vpop.permute.xlu0 %301
        %303 = vset.pattern.permute.xlu0 2
        %304 = vperm.xlu0 %303, %v177
        %v305 = vpop.permute.xlu0 %304
        %306 = vset.pattern.permute.xlu0 2
        %307 = vperm.xlu0 %306, %v178
        %v308 = vpop.permute.xlu0 %307
        %309 = vset.pattern.permute.xlu0 2
        %310 = vperm.xlu0 %309, %v179
        %v311 = vpop.permute.xlu0 %310
        %312 = vset.pattern.permute.xlu0 2
        %313 = vperm.xlu0 %312, %v180
        %v314 = vpop.permute.xlu0 %313
        %vm315 = vcmp.eq.s32.totalorder %v293, %v182
        %vm316 = vcmp.eq.s32.totalorder %v296, %v182
        %vm317 = vcmp.eq.s32.totalorder %v299, %v182
        %vm318 = vcmp.eq.s32.totalorder %v302, %v182
        %vm319 = vcmp.eq.s32.totalorder %v305, %v182
        %vm320 = vcmp.eq.s32.totalorder %v308, %v182
        %vm321 = vcmp.eq.s32.totalorder %v311, %v182
        %vm322 = vcmp.eq.s32.totalorder %v314, %v182
        %v323 = vsel %vm315, 1, 0
        %v324 = vsel %vm316, 1, 0
        %v325 = vsel %vm317, 1, 0
        %v326 = vsel %vm318, 1, 0
        %v327 = vsel %vm319, 1, 0
        %v328 = vsel %vm320, 1, 0
        %v329 = vsel %vm321, 1, 0
        %v330 = vsel %vm322, 1, 0
        %v331 = vcvt.s32.f32 %v323
        %v332 = vcvt.s32.f32 %v324
        %v333 = vcvt.s32.f32 %v325
        %v334 = vcvt.s32.f32 %v326
        %v335 = vcvt.s32.f32 %v327
        %v336 = vcvt.s32.f32 %v328
        %v337 = vcvt.s32.f32 %v329
        %v338 = vcvt.s32.f32 %v330
        %v339 = vpack.c.bf16 %v332, %v331
        %v340 = vpack.c.bf16 %v334, %v333
        %v341 = vpack.c.bf16 %v336, %v335
        %v342 = vpack.c.bf16 %v338, %v337
        %v343 = vadd.bf16 %v287, %v339
        %v344 = vadd.bf16 %v288, %v340
        %v345 = vadd.bf16 %v289, %v341
        %v346 = vadd.bf16 %v290, %v342
        %347 = vset.pattern.permute.xlu0 3
        %348 = vperm.xlu0 %347, %v173
        %v349 = vpop.permute.xlu0 %348
        %350 = vset.pattern.permute.xlu0 3
        %351 = vperm.xlu0 %350, %v174
        %v352 = vpop.permute.xlu0 %351
        %353 = vset.pattern.permute.xlu0 3
        %354 = vperm.xlu0 %353, %v175
        %v355 = vpop.permute.xlu0 %354
        %356 = vset.pattern.permute.xlu0 3
        %357 = vperm.xlu0 %356, %v176
        %v358 = vpop.permute.xlu0 %357
        %359 = vset.pattern.permute.xlu0 3
        %360 = vperm.xlu0 %359, %v177
        %v361 = vpop.permute.xlu0 %360
        %362 = vset.pattern.permute.xlu0 3
        %363 = vperm.xlu0 %362, %v178
        %v364 = vpop.permute.xlu0 %363
        %365 = vset.pattern.permute.xlu0 3
        %366 = vperm.xlu0 %365, %v179
        %v367 = vpop.permute.xlu0 %366
        %368 = vset.pattern.permute.xlu0 3
        %369 = vperm.xlu0 %368, %v180
        %v370 = vpop.permute.xlu0 %369
        %vm371 = vcmp.eq.s32.totalorder %v349, %v182
        %vm372 = vcmp.eq.s32.totalorder %v352, %v182
        %vm373 = vcmp.eq.s32.totalorder %v355, %v182
        %vm374 = vcmp.eq.s32.totalorder %v358, %v182
        %vm375 = vcmp.eq.s32.totalorder %v361, %v182
        %vm376 = vcmp.eq.s32.totalorder %v364, %v182
        %vm377 = vcmp.eq.s32.totalorder %v367, %v182
        %vm378 = vcmp.eq.s32.totalorder %v370, %v182
        %v379 = vsel %vm371, 1, 0
        %v380 = vsel %vm372, 1, 0
        %v381 = vsel %vm373, 1, 0
        %v382 = vsel %vm374, 1, 0
        %v383 = vsel %vm375, 1, 0
        %v384 = vsel %vm376, 1, 0
        %v385 = vsel %vm377, 1, 0
        %v386 = vsel %vm378, 1, 0
        %v387 = vcvt.s32.f32 %v379
        %v388 = vcvt.s32.f32 %v380
        %v389 = vcvt.s32.f32 %v381
        %v390 = vcvt.s32.f32 %v382
        %v391 = vcvt.s32.f32 %v383
        %v392 = vcvt.s32.f32 %v384
        %v393 = vcvt.s32.f32 %v385
        %v394 = vcvt.s32.f32 %v386
        %v395 = vpack.c.bf16 %v388, %v387
        %v396 = vpack.c.bf16 %v390, %v389
        %v397 = vpack.c.bf16 %v392, %v391
        %v398 = vpack.c.bf16 %v394, %v393
        %v399 = vadd.bf16 %v343, %v395
        %v400 = vadd.bf16 %v344, %v396
        %v401 = vadd.bf16 %v345, %v397
        %v402 = vadd.bf16 %v346, %v398
        %403 = vset.pattern.permute.xlu0 4
        %404 = vperm.xlu0 %403, %v173
        %v405 = vpop.permute.xlu0 %404
        %406 = vset.pattern.permute.xlu0 4
        %407 = vperm.xlu0 %406, %v174
        %v408 = vpop.permute.xlu0 %407
        %409 = vset.pattern.permute.xlu0 4
        %410 = vperm.xlu0 %409, %v175
        %v411 = vpop.permute.xlu0 %410
        %412 = vset.pattern.permute.xlu0 4
        %413 = vperm.xlu0 %412, %v176
        %v414 = vpop.permute.xlu0 %413
        %415 = vset.pattern.permute.xlu0 4
        %416 = vperm.xlu0 %415, %v177
        %v417 = vpop.permute.xlu0 %416
        %418 = vset.pattern.permute.xlu0 4
        %419 = vperm.xlu0 %418, %v178
        %v420 = vpop.permute.xlu0 %419
        %421 = vset.pattern.permute.xlu0 4
        %422 = vperm.xlu0 %421, %v179
        %v423 = vpop.permute.xlu0 %422
        %424 = vset.pattern.permute.xlu0 4
        %425 = vperm.xlu0 %424, %v180
        %v426 = vpop.permute.xlu0 %425
        %vm427 = vcmp.eq.s32.totalorder %v405, %v182
        %vm428 = vcmp.eq.s32.totalorder %v408, %v182
        %vm429 = vcmp.eq.s32.totalorder %v411, %v182
        %vm430 = vcmp.eq.s32.totalorder %v414, %v182
        %vm431 = vcmp.eq.s32.totalorder %v417, %v182
        %vm432 = vcmp.eq.s32.totalorder %v420, %v182
        %vm433 = vcmp.eq.s32.totalorder %v423, %v182
        %vm434 = vcmp.eq.s32.totalorder %v426, %v182
        %v435 = vsel %vm427, 1, 0
        %v436 = vsel %vm428, 1, 0
        %v437 = vsel %vm429, 1, 0
        %v438 = vsel %vm430, 1, 0
        %v439 = vsel %vm431, 1, 0
        %v440 = vsel %vm432, 1, 0
        %v441 = vsel %vm433, 1, 0
        %v442 = vsel %vm434, 1, 0
        %v443 = vcvt.s32.f32 %v435
        %v444 = vcvt.s32.f32 %v436
        %v445 = vcvt.s32.f32 %v437
        %v446 = vcvt.s32.f32 %v438
        %v447 = vcvt.s32.f32 %v439
        %v448 = vcvt.s32.f32 %v440
        %v449 = vcvt.s32.f32 %v441
        %v450 = vcvt.s32.f32 %v442
        %v451 = vpack.c.bf16 %v444, %v443
        %v452 = vpack.c.bf16 %v446, %v445
        %v453 = vpack.c.bf16 %v448, %v447
        %v454 = vpack.c.bf16 %v450, %v449
        %v455 = vadd.bf16 %v399, %v451
        %v456 = vadd.bf16 %v400, %v452
        %v457 = vadd.bf16 %v401, %v453
        %v458 = vadd.bf16 %v402, %v454
        %459 = vset.pattern.permute.xlu0 5
        %460 = vperm.xlu0 %459, %v173
        %v461 = vpop.permute.xlu0 %460
        %462 = vset.pattern.permute.xlu0 5
        %463 = vperm.xlu0 %462, %v174
        %v464 = vpop.permute.xlu0 %463
        %465 = vset.pattern.permute.xlu0 5
        %466 = vperm.xlu0 %465, %v175
        %v467 = vpop.permute.xlu0 %466
        %468 = vset.pattern.permute.xlu0 5
        %469 = vperm.xlu0 %468, %v176
        %v470 = vpop.permute.xlu0 %469
        %471 = vset.pattern.permute.xlu0 5
        %472 = vperm.xlu0 %471, %v177
        %v473 = vpop.permute.xlu0 %472
        %474 = vset.pattern.permute.xlu0 5
        %475 = vperm.xlu0 %474, %v178
        %v476 = vpop.permute.xlu0 %475
        %477 = vset.pattern.permute.xlu0 5
        %478 = vperm.xlu0 %477, %v179
        %v479 = vpop.permute.xlu0 %478
        %480 = vset.pattern.permute.xlu0 5
        %481 = vperm.xlu0 %480, %v180
        %v482 = vpop.permute.xlu0 %481
        %vm483 = vcmp.eq.s32.totalorder %v461, %v182
        %vm484 = vcmp.eq.s32.totalorder %v464, %v182
        %vm485 = vcmp.eq.s32.totalorder %v467, %v182
        %vm486 = vcmp.eq.s32.totalorder %v470, %v182
        %vm487 = vcmp.eq.s32.totalorder %v473, %v182
        %vm488 = vcmp.eq.s32.totalorder %v476, %v182
        %vm489 = vcmp.eq.s32.totalorder %v479, %v182
        %vm490 = vcmp.eq.s32.totalorder %v482, %v182
        %v491 = vsel %vm483, 1, 0
        %v492 = vsel %vm484, 1, 0
        %v493 = vsel %vm485, 1, 0
        %v494 = vsel %vm486, 1, 0
        %v495 = vsel %vm487, 1, 0
        %v496 = vsel %vm488, 1, 0
        %v497 = vsel %vm489, 1, 0
        %v498 = vsel %vm490, 1, 0
        %v499 = vcvt.s32.f32 %v491
        %v500 = vcvt.s32.f32 %v492
        %v501 = vcvt.s32.f32 %v493
        %v502 = vcvt.s32.f32 %v494
        %v503 = vcvt.s32.f32 %v495
        %v504 = vcvt.s32.f32 %v496
        %v505 = vcvt.s32.f32 %v497
        %v506 = vcvt.s32.f32 %v498
        %v507 = vpack.c.bf16 %v500, %v499
        %v508 = vpack.c.bf16 %v502, %v501
        %v509 = vpack.c.bf16 %v504, %v503
        %v510 = vpack.c.bf16 %v506, %v505
        %v511 = vadd.bf16 %v455, %v507
        %v512 = vadd.bf16 %v456, %v508
        %v513 = vadd.bf16 %v457, %v509
        %v514 = vadd.bf16 %v458, %v510
        %515 = vset.pattern.permute.xlu0 6
        %516 = vperm.xlu0 %515, %v173
        %v517 = vpop.permute.xlu0 %516
        %518 = vset.pattern.permute.xlu0 6
        %519 = vperm.xlu0 %518, %v174
        %v520 = vpop.permute.xlu0 %519
        %521 = vset.pattern.permute.xlu0 6
        %522 = vperm.xlu0 %521, %v175
        %v523 = vpop.permute.xlu0 %522
        %524 = vset.pattern.permute.xlu0 6
        %525 = vperm.xlu0 %524, %v176
        %v526 = vpop.permute.xlu0 %525
        %527 = vset.pattern.permute.xlu0 6
        %528 = vperm.xlu0 %527, %v177
        %v529 = vpop.permute.xlu0 %528
        %530 = vset.pattern.permute.xlu0 6
        %531 = vperm.xlu0 %530, %v178
        %v532 = vpop.permute.xlu0 %531
        %533 = vset.pattern.permute.xlu0 6
        %534 = vperm.xlu0 %533, %v179
        %v535 = vpop.permute.xlu0 %534
        %536 = vset.pattern.permute.xlu0 6
        %537 = vperm.xlu0 %536, %v180
        %v538 = vpop.permute.xlu0 %537
        %vm539 = vcmp.eq.s32.totalorder %v517, %v182
        %vm540 = vcmp.eq.s32.totalorder %v520, %v182
        %vm541 = vcmp.eq.s32.totalorder %v523, %v182
        %vm542 = vcmp.eq.s32.totalorder %v526, %v182
        %vm543 = vcmp.eq.s32.totalorder %v529, %v182
        %vm544 = vcmp.eq.s32.totalorder %v532, %v182
        %vm545 = vcmp.eq.s32.totalorder %v535, %v182
        %vm546 = vcmp.eq.s32.totalorder %v538, %v182
        %v547 = vsel %vm539, 1, 0
        %v548 = vsel %vm540, 1, 0
        %v549 = vsel %vm541, 1, 0
        %v550 = vsel %vm542, 1, 0
        %v551 = vsel %vm543, 1, 0
        %v552 = vsel %vm544, 1, 0
        %v553 = vsel %vm545, 1, 0
        %v554 = vsel %vm546, 1, 0
        %v555 = vcvt.s32.f32 %v547
        %v556 = vcvt.s32.f32 %v548
        %v557 = vcvt.s32.f32 %v549
        %v558 = vcvt.s32.f32 %v550
        %v559 = vcvt.s32.f32 %v551
        %v560 = vcvt.s32.f32 %v552
        %v561 = vcvt.s32.f32 %v553
        %v562 = vcvt.s32.f32 %v554
        %v563 = vpack.c.bf16 %v556, %v555
        %v564 = vpack.c.bf16 %v558, %v557
        %v565 = vpack.c.bf16 %v560, %v559
        %v566 = vpack.c.bf16 %v562, %v561
        %v567 = vadd.bf16 %v511, %v563
        %v568 = vadd.bf16 %v512, %v564
        %v569 = vadd.bf16 %v513, %v565
        %v570 = vadd.bf16 %v514, %v566
        %571 = vset.pattern.permute.xlu0 7
        %572 = vperm.xlu0 %571, %v173
        %v573 = vpop.permute.xlu0 %572
        %574 = vset.pattern.permute.xlu0 7
        %575 = vperm.xlu0 %574, %v174
        %v576 = vpop.permute.xlu0 %575
        %577 = vset.pattern.permute.xlu0 7
        %578 = vperm.xlu0 %577, %v175
        %v579 = vpop.permute.xlu0 %578
        %580 = vset.pattern.permute.xlu0 7
        %581 = vperm.xlu0 %580, %v176
        %v582 = vpop.permute.xlu0 %581
        %583 = vset.pattern.permute.xlu0 7
        %584 = vperm.xlu0 %583, %v177
        %v585 = vpop.permute.xlu0 %584
        %586 = vset.pattern.permute.xlu0 7
        %587 = vperm.xlu0 %586, %v178
        %v588 = vpop.permute.xlu0 %587
        %589 = vset.pattern.permute.xlu0 7
        %590 = vperm.xlu0 %589, %v179
        %v591 = vpop.permute.xlu0 %590
        %592 = vset.pattern.permute.xlu0 7
        %593 = vperm.xlu0 %592, %v180
        %v594 = vpop.permute.xlu0 %593
        %vm595 = vcmp.eq.s32.totalorder %v573, %v182
        %vm596 = vcmp.eq.s32.totalorder %v576, %v182
        %vm597 = vcmp.eq.s32.totalorder %v579, %v182
        %vm598 = vcmp.eq.s32.totalorder %v582, %v182
        %vm599 = vcmp.eq.s32.totalorder %v585, %v182
        %vm600 = vcmp.eq.s32.totalorder %v588, %v182
        %vm601 = vcmp.eq.s32.totalorder %v591, %v182
        %vm602 = vcmp.eq.s32.totalorder %v594, %v182
        %v603 = vsel %vm595, 1, 0
        %v604 = vsel %vm596, 1, 0
        %v605 = vsel %vm597, 1, 0
        %v606 = vsel %vm598, 1, 0
        %v607 = vsel %vm599, 1, 0
        %v608 = vsel %vm600, 1, 0
        %v609 = vsel %vm601, 1, 0
        %v610 = vsel %vm602, 1, 0
        %v611 = vcvt.s32.f32 %v603
        %v612 = vcvt.s32.f32 %v604
        %v613 = vcvt.s32.f32 %v605
        %v614 = vcvt.s32.f32 %v606
        %v615 = vcvt.s32.f32 %v607
        %v616 = vcvt.s32.f32 %v608
        %v617 = vcvt.s32.f32 %v609
        %v618 = vcvt.s32.f32 %v610
        %v619 = vpack.c.bf16 %v612, %v611
        %v620 = vpack.c.bf16 %v614, %v613
        %v621 = vpack.c.bf16 %v616, %v615
        %v622 = vpack.c.bf16 %v618, %v617
        %v623 = vadd.bf16 %v567, %v619
        %v624 = vadd.bf16 %v568, %v620
        %v625 = vadd.bf16 %v569, %v621
        %v626 = vadd.bf16 %v570, %v622
        %627 = vset.pattern.permute.xlu0 8
        %628 = vperm.xlu0 %627, %v173
        %v629 = vpop.permute.xlu0 %628
        %630 = vset.pattern.permute.xlu0 8
        %631 = vperm.xlu0 %630, %v174
        %v632 = vpop.permute.xlu0 %631
        %633 = vset.pattern.permute.xlu0 8
        %634 = vperm.xlu0 %633, %v175
        %v635 = vpop.permute.xlu0 %634
        %636 = vset.pattern.permute.xlu0 8
        %637 = vperm.xlu0 %636, %v176
        %v638 = vpop.permute.xlu0 %637
        %639 = vset.pattern.permute.xlu0 8
        %640 = vperm.xlu0 %639, %v177
        %v641 = vpop.permute.xlu0 %640
        %642 = vset.pattern.permute.xlu0 8
        %643 = vperm.xlu0 %642, %v178
        %v644 = vpop.permute.xlu0 %643
        %645 = vset.pattern.permute.xlu0 8
        %646 = vperm.xlu0 %645, %v179
        %v647 = vpop.permute.xlu0 %646
        %648 = vset.pattern.permute.xlu0 8
        %649 = vperm.xlu0 %648, %v180
        %v650 = vpop.permute.xlu0 %649
        %vm651 = vcmp.eq.s32.totalorder %v629, %v182
        %vm652 = vcmp.eq.s32.totalorder %v632, %v182
        %vm653 = vcmp.eq.s32.totalorder %v635, %v182
        %vm654 = vcmp.eq.s32.totalorder %v638, %v182
        %vm655 = vcmp.eq.s32.totalorder %v641, %v182
        %vm656 = vcmp.eq.s32.totalorder %v644, %v182
        %vm657 = vcmp.eq.s32.totalorder %v647, %v182
        %vm658 = vcmp.eq.s32.totalorder %v650, %v182
        %v659 = vsel %vm651, 1, 0
        %v660 = vsel %vm652, 1, 0
        %v661 = vsel %vm653, 1, 0
        %v662 = vsel %vm654, 1, 0
        %v663 = vsel %vm655, 1, 0
        %v664 = vsel %vm656, 1, 0
        %v665 = vsel %vm657, 1, 0
        %v666 = vsel %vm658, 1, 0
        %v667 = vcvt.s32.f32 %v659
        %v668 = vcvt.s32.f32 %v660
        %v669 = vcvt.s32.f32 %v661
        %v670 = vcvt.s32.f32 %v662
        %v671 = vcvt.s32.f32 %v663
        %v672 = vcvt.s32.f32 %v664
        %v673 = vcvt.s32.f32 %v665
        %v674 = vcvt.s32.f32 %v666
        %v675 = vpack.c.bf16 %v668, %v667
        %v676 = vpack.c.bf16 %v670, %v669
        %v677 = vpack.c.bf16 %v672, %v671
        %v678 = vpack.c.bf16 %v674, %v673
        %v679 = vadd.bf16 %v623, %v675
        %v680 = vadd.bf16 %v624, %v676
        %v681 = vadd.bf16 %v625, %v677
        %v682 = vadd.bf16 %v626, %v678
        %683 = vset.pattern.permute.xlu0 9
        %684 = vperm.xlu0 %683, %v173
        %v685 = vpop.permute.xlu0 %684
        %686 = vset.pattern.permute.xlu0 9
        %687 = vperm.xlu0 %686, %v174
        %v688 = vpop.permute.xlu0 %687
        %689 = vset.pattern.permute.xlu0 9
        %690 = vperm.xlu0 %689, %v175
        %v691 = vpop.permute.xlu0 %690
        %692 = vset.pattern.permute.xlu0 9
        %693 = vperm.xlu0 %692, %v176
        %v694 = vpop.permute.xlu0 %693
        %695 = vset.pattern.permute.xlu0 9
        %696 = vperm.xlu0 %695, %v177
        %v697 = vpop.permute.xlu0 %696
        %698 = vset.pattern.permute.xlu0 9
        %699 = vperm.xlu0 %698, %v178
        %v700 = vpop.permute.xlu0 %699
        %701 = vset.pattern.permute.xlu0 9
        %702 = vperm.xlu0 %701, %v179
        %v703 = vpop.permute.xlu0 %702
        %704 = vset.pattern.permute.xlu0 9
        %705 = vperm.xlu0 %704, %v180
        %v706 = vpop.permute.xlu0 %705
        %vm707 = vcmp.eq.s32.totalorder %v685, %v182
        %vm708 = vcmp.eq.s32.totalorder %v688, %v182
        %vm709 = vcmp.eq.s32.totalorder %v691, %v182
        %vm710 = vcmp.eq.s32.totalorder %v694, %v182
        %vm711 = vcmp.eq.s32.totalorder %v697, %v182
        %vm712 = vcmp.eq.s32.totalorder %v700, %v182
        %vm713 = vcmp.eq.s32.totalorder %v703, %v182
        %vm714 = vcmp.eq.s32.totalorder %v706, %v182
        %v715 = vsel %vm707, 1, 0
        %v716 = vsel %vm708, 1, 0
        %v717 = vsel %vm709, 1, 0
        %v718 = vsel %vm710, 1, 0
        %v719 = vsel %vm711, 1, 0
        %v720 = vsel %vm712, 1, 0
        %v721 = vsel %vm713, 1, 0
        %v722 = vsel %vm714, 1, 0
        %v723 = vcvt.s32.f32 %v715
        %v724 = vcvt.s32.f32 %v716
        %v725 = vcvt.s32.f32 %v717
        %v726 = vcvt.s32.f32 %v718
        %v727 = vcvt.s32.f32 %v719
        %v728 = vcvt.s32.f32 %v720
        %v729 = vcvt.s32.f32 %v721
        %v730 = vcvt.s32.f32 %v722
        %v731 = vpack.c.bf16 %v724, %v723
        %v732 = vpack.c.bf16 %v726, %v725
        %v733 = vpack.c.bf16 %v728, %v727
        %v734 = vpack.c.bf16 %v730, %v729
        %v735 = vadd.bf16 %v679, %v731
        %v736 = vadd.bf16 %v680, %v732
        %v737 = vadd.bf16 %v681, %v733
        %v738 = vadd.bf16 %v682, %v734
        %739 = vset.pattern.permute.xlu0 10
        %740 = vperm.xlu0 %739, %v173
        %v741 = vpop.permute.xlu0 %740
        %742 = vset.pattern.permute.xlu0 10
        %743 = vperm.xlu0 %742, %v174
        %v744 = vpop.permute.xlu0 %743
        %745 = vset.pattern.permute.xlu0 10
        %746 = vperm.xlu0 %745, %v175
        %v747 = vpop.permute.xlu0 %746
        %748 = vset.pattern.permute.xlu0 10
        %749 = vperm.xlu0 %748, %v176
        %v750 = vpop.permute.xlu0 %749
        %751 = vset.pattern.permute.xlu0 10
        %752 = vperm.xlu0 %751, %v177
        %v753 = vpop.permute.xlu0 %752
        %754 = vset.pattern.permute.xlu0 10
        %755 = vperm.xlu0 %754, %v178
        %v756 = vpop.permute.xlu0 %755
        %757 = vset.pattern.permute.xlu0 10
        %758 = vperm.xlu0 %757, %v179
        %v759 = vpop.permute.xlu0 %758
        %760 = vset.pattern.permute.xlu0 10
        %761 = vperm.xlu0 %760, %v180
        %v762 = vpop.permute.xlu0 %761
        %vm763 = vcmp.eq.s32.totalorder %v741, %v182
        %vm764 = vcmp.eq.s32.totalorder %v744, %v182
        %vm765 = vcmp.eq.s32.totalorder %v747, %v182
        %vm766 = vcmp.eq.s32.totalorder %v750, %v182
        %vm767 = vcmp.eq.s32.totalorder %v753, %v182
        %vm768 = vcmp.eq.s32.totalorder %v756, %v182
        %vm769 = vcmp.eq.s32.totalorder %v759, %v182
        %vm770 = vcmp.eq.s32.totalorder %v762, %v182
        %v771 = vsel %vm763, 1, 0
        %v772 = vsel %vm764, 1, 0
        %v773 = vsel %vm765, 1, 0
        %v774 = vsel %vm766, 1, 0
        %v775 = vsel %vm767, 1, 0
        %v776 = vsel %vm768, 1, 0
        %v777 = vsel %vm769, 1, 0
        %v778 = vsel %vm770, 1, 0
        %v779 = vcvt.s32.f32 %v771
        %v780 = vcvt.s32.f32 %v772
        %v781 = vcvt.s32.f32 %v773
        %v782 = vcvt.s32.f32 %v774
        %v783 = vcvt.s32.f32 %v775
        %v784 = vcvt.s32.f32 %v776
        %v785 = vcvt.s32.f32 %v777
        %v786 = vcvt.s32.f32 %v778
        %v787 = vpack.c.bf16 %v780, %v779
        %v788 = vpack.c.bf16 %v782, %v781
        %v789 = vpack.c.bf16 %v784, %v783
        %v790 = vpack.c.bf16 %v786, %v785
        %v791 = vadd.bf16 %v735, %v787
        %v792 = vadd.bf16 %v736, %v788
        %v793 = vadd.bf16 %v737, %v789
        %v794 = vadd.bf16 %v738, %v790
        %v795 = vld [vmem:[%s1] sm:$0xf]
        %v796 = vld [vmem:[%s1 + $0x4] sm:$0xf]
        %v797 = vld [vmem:[%s1 + $0x8] sm:$0xf]
        %v798 = vld [vmem:[%s1 + $0xc] sm:$0xf]
        %v799 = vld [vmem:[%s1 + $0x10] sm:$0xf]
        %v800 = vld [vmem:[%s1 + $0x14] sm:$0xf]
        %v801 = vld [vmem:[%s1 + $0x18] sm:$0xf]
        %v802 = vld [vmem:[%s1 + $0x1c] sm:$0xf]
        %v803 = vld [vmem:[%s1 + $0x20] sm:$0xf]
        %v804 = vld [vmem:[%s1 + $0x24] sm:$0xf]
        %v805 = vld [vmem:[%s1 + $0x28] sm:$0xf]
        %v806 = vld [vmem:[%s1 + $0x2c] sm:$0xf]
        %v807 = vld [vmem:[%s1 + $0x30] sm:$0xf]
        %v808 = vld [vmem:[%s1 + $0x34] sm:$0xf]
        %v809 = vld [vmem:[%s1 + $0x38] sm:$0xf]
        %v810 = vld [vmem:[%s1 + $0x3c] sm:$0xf]
        %v811 = vld [vmem:[%s2] sm:$0x1]
        %v813 = vlaneseq
        %v814 = vshrl.u32 %v813, 7
        %v815 = vsub.s32 0, %v814
        %v816 = vrot.slane %v811, %v815
        %v834 = vunpack.c.l.b16 %v795
        %v835 = vunpack.c.l.b16 %v796
        %v836 = vunpack.c.l.b16 %v797
        %v837 = vunpack.c.l.b16 %v798
        %v838 = vunpack.c.l.b16 %v799
        %v839 = vunpack.c.l.b16 %v800
        %v840 = vunpack.c.l.b16 %v801
        %v841 = vunpack.c.l.b16 %v802
        %v842 = vunpack.c.l.b16 %v803
        %v843 = vunpack.c.l.b16 %v804
        %v844 = vunpack.c.l.b16 %v805
        %v845 = vunpack.c.l.b16 %v806
        %v846 = vunpack.c.l.b16 %v807
        %v847 = vunpack.c.l.b16 %v808
        %v848 = vunpack.c.l.b16 %v809
        %v849 = vunpack.c.l.b16 %v810
        %v850 = vpack.c.b16 %v835, %v834
        %v851 = vpack.c.b16 %v837, %v836
        %v852 = vpack.c.b16 %v839, %v838
        %v853 = vpack.c.b16 %v841, %v840
        %v854 = vpack.c.b16 %v843, %v842
        %v855 = vpack.c.b16 %v845, %v844
        %v856 = vpack.c.b16 %v847, %v846
        %v857 = vpack.c.b16 %v849, %v848
        %866 = vmatprep.subr.bf16.mxu0 0
        %867 = vmatpush1.bf16.msra.mxu0 %v850
        %868 = vmatprep.subr.bf16.mxu0 0
        %869 = vmatpush1.bf16.msra.mxu0 %v851
        %870 = vmatprep.subr.bf16.mxu0 0
        %871 = vmatpush1.bf16.msra.mxu0 %v852
        %872 = vmatprep.subr.bf16.mxu0 0
        %873 = vmatpush1.bf16.msra.mxu0 %v853
        %874 = vmatprep.subr.bf16.mxu0 0
        %875 = vmatpush1.bf16.msra.mxu0 %v854
        %876 = vmatprep.subr.bf16.mxu0 0
        %877 = vmatpush1.bf16.msra.mxu0 %v855
        %878 = vmatprep.subr.bf16.mxu0 0
        %879 = vmatpush1.bf16.msra.mxu0 %v856
        %880 = vmatprep.subr.bf16.mxu0 0
        %881 = vmatpush1.bf16.msra.mxu0 %v857
        %882 = vmatprep.subr.bf16.mxu0 0
        %883 = vmatpush1.bf16.msra.mxu0 0
        %884 = vmatprep.subr.bf16.mxu0 0
        %885 = vmatpush1.bf16.msra.mxu0 0
        %886 = vmatprep.subr.bf16.mxu0 0
        %887 = vmatpush1.bf16.msra.mxu0 0
        %888 = vmatprep.subr.bf16.mxu0 0
        %889 = vmatpush1.bf16.msra.mxu0 0
        %890 = vmatprep.subr.bf16.mxu0 0
        %891 = vmatpush1.bf16.msra.mxu0 0
        %892 = vmatprep.subr.bf16.mxu0 0
        %893 = vmatpush1.bf16.msra.mxu0 0
        %894 = vmatprep.subr.bf16.mxu0 0
        %895 = vmatpush1.bf16.msra.mxu0 0
        %896 = vmatprep.subr.bf16.mxu0 0
        %897 = vmatpush1.bf16.msra.mxu0 0
        %898 = vmatprep.mubr.bf16.mxu0 0
        %899 = vmatmul.mubr.bf16.gmra.mrb[0].mxu0 %v791
        %v900 = vpop.f32.mrb[0].mxu0
        %v901 = vadd.f32 %v816, %v900
        %v902 = vpop.f32.mrb[0].mxu0
        %v903 = vpop.f32.mrb[0].mxu0
        %v904 = vadd.f32 %v816, %v903
        %v905 = vpop.f32.mrb[0].mxu0
        %906 = vmatprep.mubr.bf16.mxu0 0
        %907 = vmatmul.mubr.bf16.gmra.mrb[0].mxu0 %v792
        %v908 = vpop.f32.mrb[0].mxu0
        %v909 = vadd.f32 %v816, %v908
        %v910 = vpop.f32.mrb[0].mxu0
        %v911 = vpop.f32.mrb[0].mxu0
        %v912 = vadd.f32 %v816, %v911
        %v913 = vpop.f32.mrb[0].mxu0
        %914 = vmatprep.mubr.bf16.mxu0 0
        %915 = vmatmul.mubr.bf16.gmra.mrb[0].mxu0 %v793
        %v916 = vpop.f32.mrb[0].mxu0
        %v917 = vadd.f32 %v816, %v916
        %v918 = vpop.f32.mrb[0].mxu0
        %v919 = vpop.f32.mrb[0].mxu0
        %v920 = vadd.f32 %v816, %v919
        %v921 = vpop.f32.mrb[0].mxu0
        %922 = vmatprep.mubr.bf16.mxu0 0
        %923 = vmatmul.mubr.bf16.gmra.mrb[0].mxu0 %v794
        %v924 = vpop.f32.mrb[0].mxu0
        %v925 = vadd.f32 %v816, %v924
        %v926 = vpop.f32.mrb[0].mxu0
        %v927 = vpop.f32.mrb[0].mxu0
        %v928 = vadd.f32 %v816, %v927
        %v929 = vpop.f32.mrb[0].mxu0
        %930 = vdwg.mxu0
        %v931 = vmax.f32 %v901, 0.0
        %v932 = vmax.f32 %v904, 0.0
        %v933 = vmax.f32 %v909, 0.0
        %v934 = vmax.f32 %v912, 0.0
        %v935 = vmax.f32 %v917, 0.0
        %v936 = vmax.f32 %v920, 0.0
        %v937 = vmax.f32 %v925, 0.0
        %v938 = vmax.f32 %v928, 0.0
        %v939 = vpack.c.bf16 %v932, %v931
        %v940 = vpack.c.bf16 %v934, %v933
        %v941 = vpack.c.bf16 %v936, %v935
        %v942 = vpack.c.bf16 %v938, %v937
        %v947 = vunpack.c.l.b16 %v939
        %v948 = vunpack.c.h.b16 %v939
        %v949 = vunpack.c.l.b16 %v940
        %v950 = vunpack.c.h.b16 %v940
        %v951 = vunpack.c.l.b16 %v941
        %v952 = vunpack.c.h.b16 %v941
        %v953 = vunpack.c.l.b16 %v942
        %v954 = vunpack.c.h.b16 %v942
        %v955 = vpack.c.b16 %v947, %v947
        %v956 = vpack.c.b16 %v948, %v948
        %v957 = vpack.c.b16 %v949, %v949
        %v958 = vpack.c.b16 %v950, %v950
        %v959 = vpack.c.b16 %v951, %v951
        %v960 = vpack.c.b16 %v952, %v952
        %v961 = vpack.c.b16 %v953, %v953
        %v962 = vpack.c.b16 %v954, %v954
        %971 = vst [vmem:[%s164] sm:$0xf] %v955
        %972 = vst [vmem:[%s164 + $0x4] sm:$0xf] %v956
        %973 = vst [vmem:[%s164 + $0x8] sm:$0xf] %v957
        %974 = vst [vmem:[%s164 + $0xc] sm:$0xf] %v958
        %975 = vst [vmem:[%s164 + $0x10] sm:$0xf] %v959
        %976 = vst [vmem:[%s164 + $0x14] sm:$0xf] %v960
        %977 = vst [vmem:[%s164 + $0x18] sm:$0xf] %v961
        %978 = vst [vmem:[%s164 + $0x1c] sm:$0xf] %v962
        %s979 = sand.u32 %s93, 1
        %s980 = scalar_lea.sflag [#allocation3], %s979
        %s981 = sand.u32 %s93, 1
        %s982 = smul.addr %s981, 32
        %s983 = scalar_lea.vmem [#allocation2], %s982
        // Predicated region
        $region33: #{tpu_custom_call.1} parent=31 // pred_check
          %p984 = pneg %p103
        $region34: #{tpu_custom_call.1} parent=31 // pred_check_branch
          %986 = sbr.rel (%p984) target = $region36
        $region35: #{tpu_custom_call.1} parent=31 // pred_region
          %s987 = smul.u32 8, %s17
          %s989 = ssub.s32 512, 512
          %990 = vsyncadd %s980, %s989
          %s991 = smul.addr %s987, 64
          %s992 = scalar_lea.hbm %s3, %s991
          %s993 = sshll.u32 %s983, 4
          %s994 = int_to_ptr.vmem [resolvable:$true] %s993
          %999 = dma.vmem_to_hbm [thread:$0]  %s994, 512, %s992, %s980, 64, 64, 4
        $region36: #{tpu_custom_call.1} parent=31 // pred_fallthru
          _
      $region32: #{tpu_custom_call.1} parent=5 // pred_fallthru
        _
      %p1000 = scmp.le.s32.totalorder 2, %s12
      // Predicated region
      $region37: #{tpu_custom_call.1} parent=5 // pred_check
        %p1001 = pneg %p1000
      $region38: #{tpu_custom_call.1} parent=5 // pred_check_branch
        %1003 = sbr.rel (%p1001) target = $region40
      $region39: #{tpu_custom_call.1} parent=5 // pred_region
        %s1004 = ssub.s32 %s12, 2
        // Predicated region
        $region41: #{tpu_custom_call.1} parent=39 // pred_check
          %p1005 = pneg %p109
        $region42: #{tpu_custom_call.1} parent=39 // pred_check_branch
          %1007 = sbr.rel (%p1005) target = $region44
        $region43: #{tpu_custom_call.1} parent=39 // pred_region
          %s1008 = sand.u32 %s94, 1
          %s1009 = scalar_lea.sflag [#allocation3], %s1008
          %s1010 = sand.u32 %s94, 1
          %s1011 = smul.addr %s1010, 32
          %s1012 = scalar_lea.vmem [#allocation2], %s1011
          %1013 = dma.done %s1009, 512
        $region44: #{tpu_custom_call.1} parent=39 // pred_fallthru
          _
      $region40: #{tpu_custom_call.1} parent=5 // pred_fallthru
        _
    $region6: #{tpu_custom_call.1} parent=1 // loop_footer
      %s16 = sadd.s32 1, %s12
    $region7: #{tpu_custom_call.1} parent=1 // loop_footer_branch
      %11 = sbr.rel target = $region3
    $region8: #{tpu_custom_call.1} parent=1 // loop_exit
      _
    %1014 = vsyncpa [#allocation3], 1
    %s1015 = scalar_lea.sflag [#allocation3], 1
    %1016 = vsyncpa %s1015, 1

</llo_original>
